<compile_context>
chip_gen: v7x
topology: tpu7x:2x2x1
jax: 0.10.0
libtpu: 0.0.40
codegen_flags: <defaults>
</compile_context>

<pallas_src>
import functools

import jax
import jax.numpy as jnp
from jax.experimental import pallas as pl
from jax.experimental.pallas import tpu as pltpu


def _instance_norm(h, eps):
    # torch.nn.InstanceNorm1d (affine=False, biased variance): normalize each
    # feature channel over the node dimension, per batch instance.
    mean = jnp.mean(h, axis=0, keepdims=True)
    var = jnp.mean((h - mean) ** 2, axis=0, keepdims=True)
    return (h - mean) * jax.lax.rsqrt(var + eps)


def _attention_heads(h_prime, scores, n_head, f_out, neg_slope):
    """Per-head dense attention. h_prime: (n, n_head*f_out) head-stacked,
    scores: (n, 2*n_head) = [src scores | dst scores]."""
    outs = []
    for hd in range(n_head):  # static unroll; n_head is tiny (4 / 1)
        s = scores[:, hd:hd + 1]                              # (n, 1)
        d = scores[:, n_head + hd:n_head + hd + 1]            # (n, 1)
        attn = s + jnp.transpose(d)                           # (n, n)
        # LeakyReLU(0.2)
        attn = jnp.where(attn > 0, attn, neg_slope * attn)
        # numerically stable softmax over last axis
        attn = attn - jnp.max(attn, axis=-1, keepdims=True)
        e = jnp.exp(attn)
        attn = e * pl.reciprocal(jnp.sum(e, axis=-1, keepdims=True),
                                 approx=True)
        # attn_dropout: eval mode -> identity.
        hp = h_prime[:, hd * f_out:(hd + 1) * f_out]          # (n, f_out)
        outs.append(jnp.dot(attn, hp, preferred_element_type=jnp.float32))
    # Head-major concat along lanes == torch transpose(1,2).view(bs, n, -1).
    return jnp.concatenate(outs, axis=-1)


def _elu(x):
    # F.elu(alpha=1). Clamp the unselected branch to avoid exp overflow.
    return jnp.where(x > 0, x, jnp.exp(jnp.minimum(x, 0.0)) - 1.0)


def _gat_fused_kernel(x_ref, w1_ref, p1_ref, b1_ref, w2_ref, p2_ref, b2_ref,
                      out_ref, *, n_head1, f_out1, eps, neg_slope):
    # Block shapes (per batch element):
    #   x_ref  (1, n, f_in0)
    #   w1_ref (f_in0, n_head1*f_out1)   head-stacked layer-1 weights
    #   p1_ref (n_head1*f_out1, 2*n_head1)  fused a_src|a_dst projection
    #   b1_ref (1, n_head1*f_out1)       bias tiled per head
    #   w2_ref (n_head1*f_out1, f_out2)
    #   p2_ref (f_out2, 2)
    #   b2_ref (1, f_out2)
    #   out_ref (1, n, f_out2)
    x = x_ref[0]                                              # (n, f_in0) f32

    # ---------------- layer 1 (n_head1 heads) ----------------
    h = _instance_norm(x, eps)
    h_prime1 = jnp.dot(h, w1_ref[...],
                       preferred_element_type=jnp.float32)    # (n, nh1*fo1)
    scores1 = jnp.dot(h_prime1, p1_ref[...],
                      preferred_element_type=jnp.float32)     # (n, 2*nh1)
    out1 = _attention_heads(h_prime1, scores1, n_head1, f_out1,
                            neg_slope) + b1_ref[...]          # (n, nh1*fo1)
    # ELU + F.dropout (eval -> identity)
    x1 = _elu(out1)

    # ---------------- layer 2 (final, single head) ----------------
    h2 = _instance_norm(x1, eps)
    h_prime2 = jnp.dot(h2, w2_ref[...],
                       preferred_element_type=jnp.float32)    # (n, f_out2)
    scores2 = jnp.dot(h_prime2, p2_ref[...],
                      preferred_element_type=jnp.float32)     # (n, 2)
    out2 = _attention_heads(h_prime2, scores2, 1, h_prime2.shape[-1],
                            neg_slope) + b2_ref[...]          # (n, f_out2)

    # x.squeeze(dim=1): final layer has n_head == 1 -> already (n, f_out2).
    out_ref[0] = out2.astype(out_ref.dtype)


def _build_proj(a_src, a_dst):
    """Pack per-head a_src/a_dst into one (n_head*f_out, 2*n_head) matrix so
    all attention logits come from a single matmul against head-stacked h'."""
    n_head, f_out, _ = a_src.shape
    p = jnp.zeros((n_head * f_out, 2 * n_head), jnp.float32)
    for h in range(n_head):
        p = p.at[h * f_out:(h + 1) * f_out, h].set(a_src[h, :, 0])
        p = p.at[h * f_out:(h + 1) * f_out, n_head + h].set(a_dst[h, :, 0])
    return p


def _prepare_fused_params(params):
    (w1, a_src1, a_dst1, b1), (w2, a_src2, a_dst2, b2) = params
    n_head1, f_in1, f_out1 = w1.shape
    n_head2, f_in2, f_out2 = w2.shape
    assert n_head2 == 1, "final GAT layer must have a single head"
    assert f_in2 == n_head1 * f_out1
    W1 = jnp.transpose(w1, (1, 0, 2)).reshape(f_in1, n_head1 * f_out1)
    P1 = _build_proj(a_src1, a_dst1)
    B1 = jnp.tile(b1, n_head1).reshape(1, n_head1 * f_out1)
    W2 = jnp.transpose(w2, (1, 0, 2)).reshape(f_in2, f_out2)
    P2 = _build_proj(a_src2, a_dst2)
    B2 = b2.reshape(1, f_out2)
    return W1, P1, B1, W2, P2, B2


def gat_forward(x, params):
    """Fused 2-layer GAT forward (matches GAT.forward with n_units/n_heads
    implying two layers, the last single-headed)."""
    assert len(params) == 2, "this fused kernel implements the 2-layer config"
    bs, n, f_in0 = x.shape
    n_head1, _, f_out1 = params[0][0].shape
    f_out2 = params[1][0].shape[2]
    W1, P1, B1, W2, P2, B2 = _prepare_fused_params(params)

    kernel = functools.partial(
        _gat_fused_kernel, n_head1=n_head1, f_out1=f_out1,
        eps=1e-5, neg_slope=0.2)

    out = pl.pallas_call(
        kernel,
        out_shape=jax.ShapeDtypeStruct((bs, n, f_out2), jnp.float32),
        grid_spec=pltpu.PrefetchScalarGridSpec(
            num_scalar_prefetch=0,
            grid=(bs,),
            in_specs=[
                pl.BlockSpec((1, n, f_in0), lambda b: (b, 0, 0)),
                pl.BlockSpec(W1.shape, lambda b: (0, 0)),
                pl.BlockSpec(P1.shape, lambda b: (0, 0)),
                pl.BlockSpec(B1.shape, lambda b: (0, 0)),
                pl.BlockSpec(W2.shape, lambda b: (0, 0)),
                pl.BlockSpec(P2.shape, lambda b: (0, 0)),
                pl.BlockSpec(B2.shape, lambda b: (0, 0)),
            ],
            out_specs=pl.BlockSpec((1, n, f_out2), lambda b: (b, 0, 0)),
        ),
        compiler_params=pltpu.CompilerParams(
            dimension_semantics=("parallel",)),
    )(x, W1, P1, B1, W2, P2, B2)
    return out


def _xavier_uniform(key, shape, gain=1.414):
    # matches torch.nn.init.xavier_uniform_ fan computation for 3D tensors
    receptive = 1
    for s in shape[2:]:
        receptive *= s
    fan_in = shape[1] * receptive
    fan_out = shape[0] * receptive
    bound = gain * (6.0 / (fan_in + fan_out)) ** 0.5
    return jax.random.uniform(key, shape, jnp.float32, -bound, bound)


def make_gat_params(key, n_units, n_heads):
    """Deterministic parameter construction mirroring GAT.__init__."""
    params = []
    n_layer = len(n_units) - 1
    for i in range(n_layer):
        f_in = n_units[i] * n_heads[i - 1] if i else n_units[i]
        f_out = n_units[i + 1]
        n_head = n_heads[i]
        key, kw, ks, kd = jax.random.split(key, 4)
        w = _xavier_uniform(kw, (n_head, f_in, f_out))
        a_src = _xavier_uniform(ks, (n_head, f_out, 1))
        a_dst = _xavier_uniform(kd, (n_head, f_out, 1))
        bias = jnp.zeros((f_out,), jnp.float32)
        params.append((w, a_src, a_dst, bias))
    return params


if __name__ == "__main__":
    # Config consistent with the module (norm_list uses 32- and 64-channel
    # InstanceNorm1d): n_units=[32, 16, 32], n_heads=[4, 1].
    n_units = [32, 16, 32]
    n_heads = [4, 1]
    bs, n = 2, 8

    key = jax.random.PRNGKey(0)
    key, kx = jax.random.split(key)
    x = jax.random.normal(kx, (bs, n, n_units[0]), jnp.float32)

    params = make_gat_params(key, n_units, n_heads)

    y = gat_forward(x, params)
    y = jax.block_until_ready(y)
    assert y.shape == (bs, n, n_units[-1]), y.shape
    assert bool(jnp.all(jnp.isfinite(y)))
    print("KERNEL_OK")
</pallas_src>

<mosaic_0001>
module attributes {stable_mosaic.version = 11 : i64} {
  func.func @_gat_fused_kernel(%arg0: i32, %arg1: memref<1x8x32xf32, #tpu.memory_space<vmem>>, %arg2: memref<32x64xf32, #tpu.memory_space<vmem>>, %arg3: memref<64x8xf32, #tpu.memory_space<vmem>>, %arg4: memref<1x64xf32, #tpu.memory_space<vmem>>, %arg5: memref<64x32xf32, #tpu.memory_space<vmem>>, %arg6: memref<32x2xf32, #tpu.memory_space<vmem>>, %arg7: memref<1x32xf32, #tpu.memory_space<vmem>>, %arg8: memref<1x8x32xf32, #tpu.memory_space<vmem>>) attributes {dimension_semantics = [#tpu.dimension_semantics<parallel>], iteration_bounds = array<i64: 2>, scalar_prefetch = 0 : i64, scratch_operands = 0 : i64, tpu.core_type = #tpu.core_type<tc>, window_params = [{transform_indices = @transform_0, window_bounds = array<i64: 1, 8, 32>}, {pipeline_mode = #tpu.pipeline_mode<synchronous>, transform_indices = @transform_1, window_bounds = array<i64: 32, 64>}, {pipeline_mode = #tpu.pipeline_mode<synchronous>, transform_indices = @transform_2, window_bounds = array<i64: 64, 8>}, {pipeline_mode = #tpu.pipeline_mode<synchronous>, transform_indices = @transform_3, window_bounds = array<i64: 1, 64>}, {pipeline_mode = #tpu.pipeline_mode<synchronous>, transform_indices = @transform_4, window_bounds = array<i64: 64, 32>}, {pipeline_mode = #tpu.pipeline_mode<synchronous>, transform_indices = @transform_5, window_bounds = array<i64: 32, 2>}, {pipeline_mode = #tpu.pipeline_mode<synchronous>, transform_indices = @transform_6, window_bounds = array<i64: 1, 32>}, {transform_indices = @transform_7, window_bounds = array<i64: 1, 8, 32>}]} {
    %c0 = arith.constant 0 : index
    %c0_0 = arith.constant 0 : index
    %c0_1 = arith.constant 0 : index
    %0 = vector.load %arg1[%c0, %c0_0, %c0_1] : memref<1x8x32xf32, #tpu.memory_space<vmem>>, vector<1x8x32xf32>
    %1 = vector.shape_cast %0 : vector<1x8x32xf32> to vector<8x32xf32>
    %cst = arith.constant dense<0.000000e+00> : vector<32xf32>
    %2 = vector.multi_reduction <add>, %1, %cst [0] : vector<8x32xf32> to vector<32xf32>
    %3 = vector.shape_cast %2 : vector<32xf32> to vector<1x32xf32>
    %cst_2 = arith.constant 8.000000e+00 : f32
    %4 = vector.broadcast %cst_2 : f32 to vector<1x32xf32>
    %5 = arith.divf %3, %4 : vector<1x32xf32>
    %6 = vector.broadcast %5 : vector<1x32xf32> to vector<8x32xf32>
    %7 = arith.subf %1, %6 : vector<8x32xf32>
    %8 = arith.mulf %7, %7 : vector<8x32xf32>
    %cst_3 = arith.constant dense<0.000000e+00> : vector<32xf32>
    %9 = vector.multi_reduction <add>, %8, %cst_3 [0] : vector<8x32xf32> to vector<32xf32>
    %10 = vector.shape_cast %9 : vector<32xf32> to vector<1x32xf32>
    %cst_4 = arith.constant 8.000000e+00 : f32
    %11 = vector.broadcast %cst_4 : f32 to vector<1x32xf32>
    %12 = arith.divf %10, %11 : vector<1x32xf32>
    %13 = vector.broadcast %5 : vector<1x32xf32> to vector<8x32xf32>
    %14 = arith.subf %1, %13 : vector<8x32xf32>
    %cst_5 = arith.constant 9.99999974E-6 : f32
    %15 = vector.broadcast %cst_5 : f32 to vector<1x32xf32>
    %16 = arith.addf %12, %15 : vector<1x32xf32>
    %17 = math.rsqrt %16 : vector<1x32xf32>
    %18 = vector.broadcast %17 : vector<1x32xf32> to vector<8x32xf32>
    %19 = arith.mulf %14, %18 : vector<8x32xf32>
    %c0_6 = arith.constant 0 : index
    %c0_7 = arith.constant 0 : index
    %20 = vector.load %arg2[%c0_6, %c0_7] : memref<32x64xf32, #tpu.memory_space<vmem>>, vector<32x64xf32>
    %cst_8 = arith.constant dense<0.000000e+00> : vector<8x64xf32>
    %21 = tpu.matmul %19, %20, %cst_8 {dimension_numbers = #tpu.dot_dimension_numbers<[1], [0], [0], [1], [0, 0, 1, 1], [], []>} : vector<8x32xf32>, vector<32x64xf32>, vector<8x64xf32> -> vector<8x64xf32>
    %c0_9 = arith.constant 0 : index
    %c0_10 = arith.constant 0 : index
    %22 = vector.load %arg3[%c0_9, %c0_10] : memref<64x8xf32, #tpu.memory_space<vmem>>, vector<64x8xf32>
    %cst_11 = arith.constant dense<0.000000e+00> : vector<8x8xf32>
    %23 = tpu.matmul %21, %22, %cst_11 {dimension_numbers = #tpu.dot_dimension_numbers<[1], [0], [0], [1], [0, 0, 1, 1], [], []>} : vector<8x64xf32>, vector<64x8xf32>, vector<8x8xf32> -> vector<8x8xf32>
    %24 = vector.extract_strided_slice %23 {offsets = [0, 0], sizes = [8, 1], strides = [1, 1]} : vector<8x8xf32> to vector<8x1xf32>
    %25 = vector.extract_strided_slice %23 {offsets = [0, 4], sizes = [8, 1], strides = [1, 1]} : vector<8x8xf32> to vector<8x1xf32>
    %26 = tpu.transpose %25, [1, 0] : vector<8x1xf32> -> vector<1x8xf32>
    %27 = vector.broadcast %24 : vector<8x1xf32> to vector<8x8xf32>
    %28 = vector.broadcast %26 : vector<1x8xf32> to vector<8x8xf32>
    %29 = arith.addf %27, %28 : vector<8x8xf32>
    %cst_12 = arith.constant 0.000000e+00 : f32
    %30 = vector.broadcast %cst_12 : f32 to vector<8x8xf32>
    %31 = arith.cmpf ogt, %29, %30 : vector<8x8xf32>
    %cst_13 = arith.constant 2.000000e-01 : f32
    %32 = vector.broadcast %cst_13 : f32 to vector<8x8xf32>
    %33 = arith.mulf %32, %29 : vector<8x8xf32>
    %34 = arith.select %31, %29, %33 : vector<8x8xi1>, vector<8x8xf32>
    %cst_14 = arith.constant dense<0xFF800000> : vector<8xf32>
    %35 = vector.multi_reduction <maximumf>, %34, %cst_14 [1] : vector<8x8xf32> to vector<8xf32>
    %36 = vector.shape_cast %35 : vector<8xf32> to vector<8x1xf32>
    %37 = vector.broadcast %36 : vector<8x1xf32> to vector<8x8xf32>
    %38 = arith.subf %34, %37 : vector<8x8xf32>
    %39 = math.exp %38 : vector<8x8xf32>
    %cst_15 = arith.constant dense<0.000000e+00> : vector<8xf32>
    %40 = vector.multi_reduction <add>, %39, %cst_15 [1] : vector<8x8xf32> to vector<8xf32>
    %41 = vector.shape_cast %40 : vector<8xf32> to vector<8x1xf32>
    %42 = tpu.reciprocal %41 {approx = true} : vector<8x1xf32> -> vector<8x1xf32>
    %43 = vector.broadcast %42 : vector<8x1xf32> to vector<8x8xf32>
    %44 = arith.mulf %39, %43 : vector<8x8xf32>
    %45 = vector.extract_strided_slice %21 {offsets = [0, 0], sizes = [8, 16], strides = [1, 1]} : vector<8x64xf32> to vector<8x16xf32>
    %cst_16 = arith.constant dense<0.000000e+00> : vector<8x16xf32>
    %46 = tpu.matmul %44, %45, %cst_16 {dimension_numbers = #tpu.dot_dimension_numbers<[1], [0], [0], [1], [0, 0, 1, 1], [], []>} : vector<8x8xf32>, vector<8x16xf32>, vector<8x16xf32> -> vector<8x16xf32>
    %47 = vector.extract_strided_slice %23 {offsets = [0, 1], sizes = [8, 1], strides = [1, 1]} : vector<8x8xf32> to vector<8x1xf32>
    %48 = vector.extract_strided_slice %23 {offsets = [0, 5], sizes = [8, 1], strides = [1, 1]} : vector<8x8xf32> to vector<8x1xf32>
    %49 = tpu.transpose %48, [1, 0] : vector<8x1xf32> -> vector<1x8xf32>
    %50 = vector.broadcast %47 : vector<8x1xf32> to vector<8x8xf32>
    %51 = vector.broadcast %49 : vector<1x8xf32> to vector<8x8xf32>
    %52 = arith.addf %50, %51 : vector<8x8xf32>
    %cst_17 = arith.constant 0.000000e+00 : f32
    %53 = vector.broadcast %cst_17 : f32 to vector<8x8xf32>
    %54 = arith.cmpf ogt, %52, %53 : vector<8x8xf32>
    %cst_18 = arith.constant 2.000000e-01 : f32
    %55 = vector.broadcast %cst_18 : f32 to vector<8x8xf32>
    %56 = arith.mulf %55, %52 : vector<8x8xf32>
    %57 = arith.select %54, %52, %56 : vector<8x8xi1>, vector<8x8xf32>
    %cst_19 = arith.constant dense<0xFF800000> : vector<8xf32>
    %58 = vector.multi_reduction <maximumf>, %57, %cst_19 [1] : vector<8x8xf32> to vector<8xf32>
    %59 = vector.shape_cast %58 : vector<8xf32> to vector<8x1xf32>
    %60 = vector.broadcast %59 : vector<8x1xf32> to vector<8x8xf32>
    %61 = arith.subf %57, %60 : vector<8x8xf32>
    %62 = math.exp %61 : vector<8x8xf32>
    %cst_20 = arith.constant dense<0.000000e+00> : vector<8xf32>
    %63 = vector.multi_reduction <add>, %62, %cst_20 [1] : vector<8x8xf32> to vector<8xf32>
    %64 = vector.shape_cast %63 : vector<8xf32> to vector<8x1xf32>
    %65 = tpu.reciprocal %64 {approx = true} : vector<8x1xf32> -> vector<8x1xf32>
    %66 = vector.broadcast %65 : vector<8x1xf32> to vector<8x8xf32>
    %67 = arith.mulf %62, %66 : vector<8x8xf32>
    %68 = vector.extract_strided_slice %21 {offsets = [0, 16], sizes = [8, 16], strides = [1, 1]} : vector<8x64xf32> to vector<8x16xf32>
    %cst_21 = arith.constant dense<0.000000e+00> : vector<8x16xf32>
    %69 = tpu.matmul %67, %68, %cst_21 {dimension_numbers = #tpu.dot_dimension_numbers<[1], [0], [0], [1], [0, 0, 1, 1], [], []>} : vector<8x8xf32>, vector<8x16xf32>, vector<8x16xf32> -> vector<8x16xf32>
    %70 = vector.extract_strided_slice %23 {offsets = [0, 2], sizes = [8, 1], strides = [1, 1]} : vector<8x8xf32> to vector<8x1xf32>
    %71 = vector.extract_strided_slice %23 {offsets = [0, 6], sizes = [8, 1], strides = [1, 1]} : vector<8x8xf32> to vector<8x1xf32>
    %72 = tpu.transpose %71, [1, 0] : vector<8x1xf32> -> vector<1x8xf32>
    %73 = vector.broadcast %70 : vector<8x1xf32> to vector<8x8xf32>
    %74 = vector.broadcast %72 : vector<1x8xf32> to vector<8x8xf32>
    %75 = arith.addf %73, %74 : vector<8x8xf32>
    %cst_22 = arith.constant 0.000000e+00 : f32
    %76 = vector.broadcast %cst_22 : f32 to vector<8x8xf32>
    %77 = arith.cmpf ogt, %75, %76 : vector<8x8xf32>
    %cst_23 = arith.constant 2.000000e-01 : f32
    %78 = vector.broadcast %cst_23 : f32 to vector<8x8xf32>
    %79 = arith.mulf %78, %75 : vector<8x8xf32>
    %80 = arith.select %77, %75, %79 : vector<8x8xi1>, vector<8x8xf32>
    %cst_24 = arith.constant dense<0xFF800000> : vector<8xf32>
    %81 = vector.multi_reduction <maximumf>, %80, %cst_24 [1] : vector<8x8xf32> to vector<8xf32>
    %82 = vector.shape_cast %81 : vector<8xf32> to vector<8x1xf32>
    %83 = vector.broadcast %82 : vector<8x1xf32> to vector<8x8xf32>
    %84 = arith.subf %80, %83 : vector<8x8xf32>
    %85 = math.exp %84 : vector<8x8xf32>
    %cst_25 = arith.constant dense<0.000000e+00> : vector<8xf32>
    %86 = vector.multi_reduction <add>, %85, %cst_25 [1] : vector<8x8xf32> to vector<8xf32>
    %87 = vector.shape_cast %86 : vector<8xf32> to vector<8x1xf32>
    %88 = tpu.reciprocal %87 {approx = true} : vector<8x1xf32> -> vector<8x1xf32>
    %89 = vector.broadcast %88 : vector<8x1xf32> to vector<8x8xf32>
    %90 = arith.mulf %85, %89 : vector<8x8xf32>
    %91 = vector.extract_strided_slice %21 {offsets = [0, 32], sizes = [8, 16], strides = [1, 1]} : vector<8x64xf32> to vector<8x16xf32>
    %cst_26 = arith.constant dense<0.000000e+00> : vector<8x16xf32>
    %92 = tpu.matmul %90, %91, %cst_26 {dimension_numbers = #tpu.dot_dimension_numbers<[1], [0], [0], [1], [0, 0, 1, 1], [], []>} : vector<8x8xf32>, vector<8x16xf32>, vector<8x16xf32> -> vector<8x16xf32>
    %93 = vector.extract_strided_slice %23 {offsets = [0, 3], sizes = [8, 1], strides = [1, 1]} : vector<8x8xf32> to vector<8x1xf32>
    %94 = vector.extract_strided_slice %23 {offsets = [0, 7], sizes = [8, 1], strides = [1, 1]} : vector<8x8xf32> to vector<8x1xf32>
    %95 = tpu.transpose %94, [1, 0] : vector<8x1xf32> -> vector<1x8xf32>
    %96 = vector.broadcast %93 : vector<8x1xf32> to vector<8x8xf32>
    %97 = vector.broadcast %95 : vector<1x8xf32> to vector<8x8xf32>
    %98 = arith.addf %96, %97 : vector<8x8xf32>
    %cst_27 = arith.constant 0.000000e+00 : f32
    %99 = vector.broadcast %cst_27 : f32 to vector<8x8xf32>
    %100 = arith.cmpf ogt, %98, %99 : vector<8x8xf32>
    %cst_28 = arith.constant 2.000000e-01 : f32
    %101 = vector.broadcast %cst_28 : f32 to vector<8x8xf32>
    %102 = arith.mulf %101, %98 : vector<8x8xf32>
    %103 = arith.select %100, %98, %102 : vector<8x8xi1>, vector<8x8xf32>
    %cst_29 = arith.constant dense<0xFF800000> : vector<8xf32>
    %104 = vector.multi_reduction <maximumf>, %103, %cst_29 [1] : vector<8x8xf32> to vector<8xf32>
    %105 = vector.shape_cast %104 : vector<8xf32> to vector<8x1xf32>
    %106 = vector.broadcast %105 : vector<8x1xf32> to vector<8x8xf32>
    %107 = arith.subf %103, %106 : vector<8x8xf32>
    %108 = math.exp %107 : vector<8x8xf32>
    %cst_30 = arith.constant dense<0.000000e+00> : vector<8xf32>
    %109 = vector.multi_reduction <add>, %108, %cst_30 [1] : vector<8x8xf32> to vector<8xf32>
    %110 = vector.shape_cast %109 : vector<8xf32> to vector<8x1xf32>
    %111 = tpu.reciprocal %110 {approx = true} : vector<8x1xf32> -> vector<8x1xf32>
    %112 = vector.broadcast %111 : vector<8x1xf32> to vector<8x8xf32>
    %113 = arith.mulf %108, %112 : vector<8x8xf32>
    %114 = vector.extract_strided_slice %21 {offsets = [0, 48], sizes = [8, 16], strides = [1, 1]} : vector<8x64xf32> to vector<8x16xf32>
    %cst_31 = arith.constant dense<0.000000e+00> : vector<8x16xf32>
    %115 = tpu.matmul %113, %114, %cst_31 {dimension_numbers = #tpu.dot_dimension_numbers<[1], [0], [0], [1], [0, 0, 1, 1], [], []>} : vector<8x8xf32>, vector<8x16xf32>, vector<8x16xf32> -> vector<8x16xf32>
    %116 = tpu.concatenate %46, %69, %92, %115 in 1 : vector<8x16xf32>, vector<8x16xf32>, vector<8x16xf32>, vector<8x16xf32> -> vector<8x64xf32>
    %c0_32 = arith.constant 0 : index
    %c0_33 = arith.constant 0 : index
    %117 = vector.load %arg4[%c0_32, %c0_33] : memref<1x64xf32, #tpu.memory_space<vmem>>, vector<1x64xf32>
    %118 = vector.broadcast %117 : vector<1x64xf32> to vector<8x64xf32>
    %119 = arith.addf %116, %118 : vector<8x64xf32>
    %cst_34 = arith.constant 0.000000e+00 : f32
    %120 = vector.broadcast %cst_34 : f32 to vector<8x64xf32>
    %121 = arith.cmpf ogt, %119, %120 : vector<8x64xf32>
    %cst_35 = arith.constant 0.000000e+00 : f32
    %122 = vector.broadcast %cst_35 : f32 to vector<8x64xf32>
    %123 = arith.minimumf %119, %122 : vector<8x64xf32>
    %124 = math.exp %123 : vector<8x64xf32>
    %cst_36 = arith.constant 1.000000e+00 : f32
    %125 = vector.broadcast %cst_36 : f32 to vector<8x64xf32>
    %126 = arith.subf %124, %125 : vector<8x64xf32>
    %127 = arith.select %121, %119, %126 : vector<8x64xi1>, vector<8x64xf32>
    %cst_37 = arith.constant dense<0.000000e+00> : vector<64xf32>
    %128 = vector.multi_reduction <add>, %127, %cst_37 [0] : vector<8x64xf32> to vector<64xf32>
    %129 = vector.shape_cast %128 : vector<64xf32> to vector<1x64xf32>
    %cst_38 = arith.constant 8.000000e+00 : f32
    %130 = vector.broadcast %cst_38 : f32 to vector<1x64xf32>
    %131 = arith.divf %129, %130 : vector<1x64xf32>
    %132 = vector.broadcast %131 : vector<1x64xf32> to vector<8x64xf32>
    %133 = arith.subf %127, %132 : vector<8x64xf32>
    %134 = arith.mulf %133, %133 : vector<8x64xf32>
    %cst_39 = arith.constant dense<0.000000e+00> : vector<64xf32>
    %135 = vector.multi_reduction <add>, %134, %cst_39 [0] : vector<8x64xf32> to vector<64xf32>
    %136 = vector.shape_cast %135 : vector<64xf32> to vector<1x64xf32>
    %cst_40 = arith.constant 8.000000e+00 : f32
    %137 = vector.broadcast %cst_40 : f32 to vector<1x64xf32>
    %138 = arith.divf %136, %137 : vector<1x64xf32>
    %139 = vector.broadcast %131 : vector<1x64xf32> to vector<8x64xf32>
    %140 = arith.subf %127, %139 : vector<8x64xf32>
    %cst_41 = arith.constant 9.99999974E-6 : f32
    %141 = vector.broadcast %cst_41 : f32 to vector<1x64xf32>
    %142 = arith.addf %138, %141 : vector<1x64xf32>
    %143 = math.rsqrt %142 : vector<1x64xf32>
    %144 = vector.broadcast %143 : vector<1x64xf32> to vector<8x64xf32>
    %145 = arith.mulf %140, %144 : vector<8x64xf32>
    %c0_42 = arith.constant 0 : index
    %c0_43 = arith.constant 0 : index
    %146 = vector.load %arg5[%c0_42, %c0_43] : memref<64x32xf32, #tpu.memory_space<vmem>>, vector<64x32xf32>
    %cst_44 = arith.constant dense<0.000000e+00> : vector<8x32xf32>
    %147 = tpu.matmul %145, %146, %cst_44 {dimension_numbers = #tpu.dot_dimension_numbers<[1], [0], [0], [1], [0, 0, 1, 1], [], []>} : vector<8x64xf32>, vector<64x32xf32>, vector<8x32xf32> -> vector<8x32xf32>
    %c0_45 = arith.constant 0 : index
    %c0_46 = arith.constant 0 : index
    %148 = vector.load %arg6[%c0_45, %c0_46] : memref<32x2xf32, #tpu.memory_space<vmem>>, vector<32x2xf32>
    %cst_47 = arith.constant dense<0.000000e+00> : vector<8x2xf32>
    %149 = tpu.matmul %147, %148, %cst_47 {dimension_numbers = #tpu.dot_dimension_numbers<[1], [0], [0], [1], [0, 0, 1, 1], [], []>} : vector<8x32xf32>, vector<32x2xf32>, vector<8x2xf32> -> vector<8x2xf32>
    %150 = vector.extract_strided_slice %149 {offsets = [0, 0], sizes = [8, 1], strides = [1, 1]} : vector<8x2xf32> to vector<8x1xf32>
    %151 = vector.extract_strided_slice %149 {offsets = [0, 1], sizes = [8, 1], strides = [1, 1]} : vector<8x2xf32> to vector<8x1xf32>
    %152 = tpu.transpose %151, [1, 0] : vector<8x1xf32> -> vector<1x8xf32>
    %153 = vector.broadcast %150 : vector<8x1xf32> to vector<8x8xf32>
    %154 = vector.broadcast %152 : vector<1x8xf32> to vector<8x8xf32>
    %155 = arith.addf %153, %154 : vector<8x8xf32>
    %cst_48 = arith.constant 0.000000e+00 : f32
    %156 = vector.broadcast %cst_48 : f32 to vector<8x8xf32>
    %157 = arith.cmpf ogt, %155, %156 : vector<8x8xf32>
    %cst_49 = arith.constant 2.000000e-01 : f32
    %158 = vector.broadcast %cst_49 : f32 to vector<8x8xf32>
    %159 = arith.mulf %158, %155 : vector<8x8xf32>
    %160 = arith.select %157, %155, %159 : vector<8x8xi1>, vector<8x8xf32>
    %cst_50 = arith.constant dense<0xFF800000> : vector<8xf32>
    %161 = vector.multi_reduction <maximumf>, %160, %cst_50 [1] : vector<8x8xf32> to vector<8xf32>
    %162 = vector.shape_cast %161 : vector<8xf32> to vector<8x1xf32>
    %163 = vector.broadcast %162 : vector<8x1xf32> to vector<8x8xf32>
    %164 = arith.subf %160, %163 : vector<8x8xf32>
    %165 = math.exp %164 : vector<8x8xf32>
    %cst_51 = arith.constant dense<0.000000e+00> : vector<8xf32>
    %166 = vector.multi_reduction <add>, %165, %cst_51 [1] : vector<8x8xf32> to vector<8xf32>
    %167 = vector.shape_cast %166 : vector<8xf32> to vector<8x1xf32>
    %168 = tpu.reciprocal %167 {approx = true} : vector<8x1xf32> -> vector<8x1xf32>
    %169 = vector.broadcast %168 : vector<8x1xf32> to vector<8x8xf32>
    %170 = arith.mulf %165, %169 : vector<8x8xf32>
    %cst_52 = arith.constant dense<0.000000e+00> : vector<8x32xf32>
    %171 = tpu.matmul %170, %147, %cst_52 {dimension_numbers = #tpu.dot_dimension_numbers<[1], [0], [0], [1], [0, 0, 1, 1], [], []>} : vector<8x8xf32>, vector<8x32xf32>, vector<8x32xf32> -> vector<8x32xf32>
    %c0_53 = arith.constant 0 : index
    %c0_54 = arith.constant 0 : index
    %172 = vector.load %arg7[%c0_53, %c0_54] : memref<1x32xf32, #tpu.memory_space<vmem>>, vector<1x32xf32>
    %173 = vector.broadcast %172 : vector<1x32xf32> to vector<8x32xf32>
    %174 = arith.addf %171, %173 : vector<8x32xf32>
    %c0_55 = arith.constant 0 : index
    %c0_56 = arith.constant 0 : index
    %c0_57 = arith.constant 0 : index
    %175 = vector.load %arg8[%c0_55, %c0_56, %c0_57] : memref<1x8x32xf32, #tpu.memory_space<vmem>>, vector<1x8x32xf32>
    %176 = vector.shape_cast %175 : vector<1x8x32xf32> to vector<8x32xf32>
    %177 = vector.shape_cast %174 : vector<8x32xf32> to vector<1x8x32xf32>
    tpu.vector_store %arg8[%c0_55, %c0_56, %c0_57], %177 {strides = array<i32>} : memref<1x8x32xf32, #tpu.memory_space<vmem>>, vector<1x8x32xf32>,
    return
  }
  func.func @transform_0(%arg0: i32) -> (i32, i32, i32) {
    %c0_i32 = arith.constant 0 : i32
    %c0_i32_0 = arith.constant 0 : i32
    %c0_i32_1 = arith.constant 0 : i32
    return %arg0, %c0_i32, %c0_i32_0 : i32, i32, i32
  }
  func.func @transform_1(%arg0: i32) -> (i32, i32) {
    %c0_i32 = arith.constant 0 : i32
    %c0_i32_0 = arith.constant 0 : i32
    %c0_i32_1 = arith.constant 0 : i32
    return %c0_i32, %c0_i32_0 : i32, i32
  }
  func.func @transform_2(%arg0: i32) -> (i32, i32) {
    %c0_i32 = arith.constant 0 : i32
    %c0_i32_0 = arith.constant 0 : i32
    %c0_i32_1 = arith.constant 0 : i32
    return %c0_i32, %c0_i32_0 : i32, i32
  }
  func.func @transform_3(%arg0: i32) -> (i32, i32) {
    %c0_i32 = arith.constant 0 : i32
    %c0_i32_0 = arith.constant 0 : i32
    %c0_i32_1 = arith.constant 0 : i32
    return %c0_i32, %c0_i32_0 : i32, i32
  }
  func.func @transform_4(%arg0: i32) -> (i32, i32) {
    %c0_i32 = arith.constant 0 : i32
    %c0_i32_0 = arith.constant 0 : i32
    %c0_i32_1 = arith.constant 0 : i32
    return %c0_i32, %c0_i32_0 : i32, i32
  }
  func.func @transform_5(%arg0: i32) -> (i32, i32) {
    %c0_i32 = arith.constant 0 : i32
    %c0_i32_0 = arith.constant 0 : i32
    %c0_i32_1 = arith.constant 0 : i32
    return %c0_i32, %c0_i32_0 : i32, i32
  }
  func.func @transform_6(%arg0: i32) -> (i32, i32) {
    %c0_i32 = arith.constant 0 : i32
    %c0_i32_0 = arith.constant 0 : i32
    %c0_i32_1 = arith.constant 0 : i32
    return %c0_i32, %c0_i32_0 : i32, i32
  }
  func.func @transform_7(%arg0: i32) -> (i32, i32, i32) {
    %c0_i32 = arith.constant 0 : i32
    %c0_i32_0 = arith.constant 0 : i32
    %c0_i32_1 = arith.constant 0 : i32
    return %arg0, %c0_i32, %c0_i32_0 : i32, i32, i32
  }
}

</mosaic_0001>

<llo_original>
// kernel: tpu_custom_call.1
$region0: #{tpu_custom_call.1}
  #allocation0 [shape = 'u32[]', space=smem, size = 0x4, offset = 0x4, fixed_abs, tag = 'smem constant byte address 0x4 - core index']
  #allocation1 [shape = 'u32[144,128]{1,0:T(1,128)}', space=vmem, size = 0x12000, scoped, tag = 'internal scratch']
  %s0 = inlined_call_operand.vmem [shape: f32[2,8,32], index: 0, kind: input, shape index: {}]
  %s1 = inlined_call_operand.vmem [shape: f32[32,64], index: 1, kind: input, shape index: {}]
  %s2 = inlined_call_operand.vmem [shape: f32[64,8], index: 2, kind: input, shape index: {}]
  %s3 = inlined_call_operand.vmem [shape: f32[1,64], index: 3, kind: input, shape index: {}]
  %s4 = inlined_call_operand.vmem [shape: f32[64,32], index: 4, kind: input, shape index: {}]
  %s5 = inlined_call_operand.vmem [shape: f32[32,2], index: 5, kind: input, shape index: {}]
  %s6 = inlined_call_operand.vmem [shape: f32[1,32], index: 6, kind: input, shape index: {}]
  %s7 = inlined_call_operand.hbm [shape: f32[2,8,32], index: 7, kind: output, shape index: {}]
  %s8 = sld [smem:[#allocation0]]
  $region61: #{tpu_custom_call.1} parent=0
    _
  %s10 = ssub.s32 1, %s8
  %s11 = scalar_select 0, %s10, %s8
  $region1: #{tpu_custom_call.1} parent=0
    #allocation2 [shape = 'u8[8192]{0}', space=vmem, size = 0x2000, scoped, tag = 'output window, operand 0']
    #allocation3 [shape = 's32[2]{0}', space=sflag, size = 0x8, scoped, tag = 'scoped memory for tpu_custom_call.1']
    %12 = vsyncpa [#allocation3], 0
    %s13 = scalar_lea.sflag [#allocation3], 1
    %14 = vsyncpa %s13, 0
    loop: start=0, step=1, limit=4
    $region2: #{tpu_custom_call.1} parent=1 // loop_pre_header
      _
    $region3: #{tpu_custom_call.1} parent=1 // loop_header
      %s16 = sphi 0, %s20
      %p17 = scmp.ge.s32.totalorder %s16, 4
      %s26 = sphi 0, %s28
      %s29 = sphi 0, %s26
      %s30 = sphi 0, %s29
      %s46 = sphi 0, %s30
      %s50 = sphi 0, %s50
      %s52 = sphi 0, %s50
      %s53 = sphi 0, %s52
      %s67 = sphi 0, %s53
      %s71 = sphi 0, %s71
      %s73 = sphi 0, %s71
      %s74 = sphi 0, %s73
      %s88 = sphi 0, %s74
      %s92 = sphi 0, %s92
      %s94 = sphi 0, %s92
      %s95 = sphi 0, %s94
      %s109 = sphi 0, %s95
      %s113 = sphi 0, %s113
      %s115 = sphi 0, %s113
      %s116 = sphi 0, %s115
      %s130 = sphi 0, %s116
      %s134 = sphi 0, %s134
      %s136 = sphi 0, %s134
      %s137 = sphi 0, %s136
      %s151 = sphi 0, %s137
      %s155 = sphi 0, %s155
      %s157 = sphi 0, %s155
      %s158 = sphi 0, %s157
      %s172 = sphi 0, %s158
      %s178 = sphi 0, %s180
      %s181 = sphi 0, %s178
      %s182 = sphi 0, %s181
      %s198 = sphi 0, %s182
    $region4: #{tpu_custom_call.1} parent=1 // loop_header_branch
      %19 = sbr.rel (%p17) target = $region8
    $region5: #{tpu_custom_call.1} parent=1 // loop_body
      %s21 = ssub.s32 %s16, 1
      %s22 = ssub.s32 %s16, 2
      %s23 = sadd.s32 %s16, 1
      %s24 = ssub.s32 %s16, %s23
      %p25 = scmp.eq.s32.totalorder %s24, 0
      %s27 = sadd.s32 %s26, 1
      %s28 = scalar_select %p25, %s26, %s27
      %p31 = pneg %p25
      %p32 = scmp.eq.s32.totalorder %s16, 1
      %p33 = por %p31, %p32
      %p34 = scmp.ne.s32.totalorder %s26, %s29
      %p35 = scmp.eq.s32.totalorder %s16, 0
      %p36 = por %p34, %p35
      %p37 = scmp.ne.s32.totalorder %s26, %s29
      %p38 = scmp.eq.s32.totalorder %s21, 1
      %p39 = por %p37, %p38
      %p40 = scmp.ne.s32.totalorder %s29, %s30
      %p41 = scmp.eq.s32.totalorder %s21, 0
      %p42 = por %p40, %p41
      %p43 = scmp.ne.s32.totalorder %s29, %s30
      %p44 = scmp.eq.s32.totalorder %s22, 1
      %p45 = por %p43, %p44
      %p47 = scmp.ne.s32.totalorder %s30, %s46
      %p48 = scmp.eq.s32.totalorder %s22, 0
      %p49 = por %p47, %p48
      %s51 = sadd.s32 %s50, 1
      %p54 = scmp.eq.s32.totalorder %s16, 1
      %p55 = scmp.ne.s32.totalorder %s50, %s52
      %p56 = scmp.eq.s32.totalorder %s16, 0
      %p57 = por %p55, %p56
      %p58 = scmp.ne.s32.totalorder %s50, %s52
      %p59 = scmp.eq.s32.totalorder %s21, 1
      %p60 = por %p58, %p59
      %p61 = scmp.ne.s32.totalorder %s52, %s53
      %p62 = scmp.eq.s32.totalorder %s21, 0
      %p63 = por %p61, %p62
      %p64 = scmp.ne.s32.totalorder %s52, %s53
      %p65 = scmp.eq.s32.totalorder %s22, 1
      %p66 = por %p64, %p65
      %p68 = scmp.ne.s32.totalorder %s53, %s67
      %p69 = scmp.eq.s32.totalorder %s22, 0
      %p70 = por %p68, %p69
      %s72 = sadd.s32 %s71, 1
      %p75 = scmp.eq.s32.totalorder %s16, 1
      %p76 = scmp.ne.s32.totalorder %s71, %s73
      %p77 = scmp.eq.s32.totalorder %s16, 0
      %p78 = por %p76, %p77
      %p79 = scmp.ne.s32.totalorder %s71, %s73
      %p80 = scmp.eq.s32.totalorder %s21, 1
      %p81 = por %p79, %p80
      %p82 = scmp.ne.s32.totalorder %s73, %s74
      %p83 = scmp.eq.s32.totalorder %s21, 0
      %p84 = por %p82, %p83
      %p85 = scmp.ne.s32.totalorder %s73, %s74
      %p86 = scmp.eq.s32.totalorder %s22, 1
      %p87 = por %p85, %p86
      %p89 = scmp.ne.s32.totalorder %s74, %s88
      %p90 = scmp.eq.s32.totalorder %s22, 0
      %p91 = por %p89, %p90
      %s93 = sadd.s32 %s92, 1
      %p96 = scmp.eq.s32.totalorder %s16, 1
      %p97 = scmp.ne.s32.totalorder %s92, %s94
      %p98 = scmp.eq.s32.totalorder %s16, 0
      %p99 = por %p97, %p98
      %p100 = scmp.ne.s32.totalorder %s92, %s94
      %p101 = scmp.eq.s32.totalorder %s21, 1
      %p102 = por %p100, %p101
      %p103 = scmp.ne.s32.totalorder %s94, %s95
      %p104 = scmp.eq.s32.totalorder %s21, 0
      %p105 = por %p103, %p104
      %p106 = scmp.ne.s32.totalorder %s94, %s95
      %p107 = scmp.eq.s32.totalorder %s22, 1
      %p108 = por %p106, %p107
      %p110 = scmp.ne.s32.totalorder %s95, %s109
      %p111 = scmp.eq.s32.totalorder %s22, 0
      %p112 = por %p110, %p111
      %s114 = sadd.s32 %s113, 1
      %p117 = scmp.eq.s32.totalorder %s16, 1
      %p118 = scmp.ne.s32.totalorder %s113, %s115
      %p119 = scmp.eq.s32.totalorder %s16, 0
      %p120 = por %p118, %p119
      %p121 = scmp.ne.s32.totalorder %s113, %s115
      %p122 = scmp.eq.s32.totalorder %s21, 1
      %p123 = por %p121, %p122
      %p124 = scmp.ne.s32.totalorder %s115, %s116
      %p125 = scmp.eq.s32.totalorder %s21, 0
      %p126 = por %p124, %p125
      %p127 = scmp.ne.s32.totalorder %s115, %s116
      %p128 = scmp.eq.s32.totalorder %s22, 1
      %p129 = por %p127, %p128
      %p131 = scmp.ne.s32.totalorder %s116, %s130
      %p132 = scmp.eq.s32.totalorder %s22, 0
      %p133 = por %p131, %p132
      %s135 = sadd.s32 %s134, 1
      %p138 = scmp.eq.s32.totalorder %s16, 1
      %p139 = scmp.ne.s32.totalorder %s134, %s136
      %p140 = scmp.eq.s32.totalorder %s16, 0
      %p141 = por %p139, %p140
      %p142 = scmp.ne.s32.totalorder %s134, %s136
      %p143 = scmp.eq.s32.totalorder %s21, 1
      %p144 = por %p142, %p143
      %p145 = scmp.ne.s32.totalorder %s136, %s137
      %p146 = scmp.eq.s32.totalorder %s21, 0
      %p147 = por %p145, %p146
      %p148 = scmp.ne.s32.totalorder %s136, %s137
      %p149 = scmp.eq.s32.totalorder %s22, 1
      %p150 = por %p148, %p149
      %p152 = scmp.ne.s32.totalorder %s137, %s151
      %p153 = scmp.eq.s32.totalorder %s22, 0
      %p154 = por %p152, %p153
      %s156 = sadd.s32 %s155, 1
      %p159 = scmp.eq.s32.totalorder %s16, 1
      %p160 = scmp.ne.s32.totalorder %s155, %s157
      %p161 = scmp.eq.s32.totalorder %s16, 0
      %p162 = por %p160, %p161
      %p163 = scmp.ne.s32.totalorder %s155, %s157
      %p164 = scmp.eq.s32.totalorder %s21, 1
      %p165 = por %p163, %p164
      %p166 = scmp.ne.s32.totalorder %s157, %s158
      %p167 = scmp.eq.s32.totalorder %s21, 0
      %p168 = por %p166, %p167
      %p169 = scmp.ne.s32.totalorder %s157, %s158
      %p170 = scmp.eq.s32.totalorder %s22, 1
      %p171 = por %p169, %p170
      %p173 = scmp.ne.s32.totalorder %s158, %s172
      %p174 = scmp.eq.s32.totalorder %s22, 0
      %p175 = por %p173, %p174
      %s176 = ssub.s32 %s16, %s23
      %p177 = scmp.eq.s32.totalorder %s176, 0
      %s179 = sadd.s32 %s178, 1
      %s180 = scalar_select %p177, %s178, %s179
      %p183 = pneg %p177
      %p184 = scmp.eq.s32.totalorder %s16, 1
      %p185 = por %p183, %p184
      %p186 = scmp.ne.s32.totalorder %s178, %s181
      %p187 = scmp.eq.s32.totalorder %s16, 0
      %p188 = por %p186, %p187
      %p189 = scmp.ne.s32.totalorder %s178, %s181
      %p190 = scmp.eq.s32.totalorder %s21, 1
      %p191 = por %p189, %p190
      %p192 = scmp.ne.s32.totalorder %s181, %s182
      %p193 = scmp.eq.s32.totalorder %s21, 0
      %p194 = por %p192, %p193
      %p195 = scmp.ne.s32.totalorder %s181, %s182
      %p196 = scmp.eq.s32.totalorder %s22, 1
      %p197 = por %p195, %p196
      %p199 = scmp.ne.s32.totalorder %s182, %s198
      %p200 = scmp.eq.s32.totalorder %s22, 0
      %p201 = por %p199, %p200
      %p202 = scmp.le.s32.totalorder 1, %s16
      %p203 = scmp.lt.s32.totalorder %s16, 3
      %p204 = pnand %p202, %p203
      %p205 = pneg %p204
      // Predicated region
      $region9: #{tpu_custom_call.1} parent=5 // pred_check
        _
      $region10: #{tpu_custom_call.1} parent=5 // pred_check_branch
        %207 = sbr.rel (%p204) target = $region12
      $region11: #{tpu_custom_call.1} parent=5 // pred_region
        %s208 = ssub.s32 %s16, 1
        // Predicated region
        $region13: #{tpu_custom_call.1} parent=11 // pred_check
          %p209 = pneg %p63
        $region14: #{tpu_custom_call.1} parent=11 // pred_check_branch
          %211 = sbr.rel (%p209) target = $region16
        $region15: #{tpu_custom_call.1} parent=11 // pred_region
          _
        $region16: #{tpu_custom_call.1} parent=11 // pred_fallthru
          _
        // Predicated region
        $region17: #{tpu_custom_call.1} parent=11 // pred_check
          %p212 = pneg %p84
        $region18: #{tpu_custom_call.1} parent=11 // pred_check_branch
          %214 = sbr.rel (%p212) target = $region20
        $region19: #{tpu_custom_call.1} parent=11 // pred_region
          _
        $region20: #{tpu_custom_call.1} parent=11 // pred_fallthru
          _
        // Predicated region
        $region21: #{tpu_custom_call.1} parent=11 // pred_check
          %p215 = pneg %p105
        $region22: #{tpu_custom_call.1} parent=11 // pred_check_branch
          %217 = sbr.rel (%p215) target = $region24
        $region23: #{tpu_custom_call.1} parent=11 // pred_region
          _
        $region24: #{tpu_custom_call.1} parent=11 // pred_fallthru
          _
        // Predicated region
        $region25: #{tpu_custom_call.1} parent=11 // pred_check
          %p218 = pneg %p126
        $region26: #{tpu_custom_call.1} parent=11 // pred_check_branch
          %220 = sbr.rel (%p218) target = $region28
        $region27: #{tpu_custom_call.1} parent=11 // pred_region
          _
        $region28: #{tpu_custom_call.1} parent=11 // pred_fallthru
          _
        // Predicated region
        $region29: #{tpu_custom_call.1} parent=11 // pred_check
          %p221 = pneg %p147
        $region30: #{tpu_custom_call.1} parent=11 // pred_check_branch
          %223 = sbr.rel (%p221) target = $region32
        $region31: #{tpu_custom_call.1} parent=11 // pred_region
          _
        $region32: #{tpu_custom_call.1} parent=11 // pred_fallthru
          _
        // Predicated region
        $region33: #{tpu_custom_call.1} parent=11 // pred_check
          %p224 = pneg %p168
        $region34: #{tpu_custom_call.1} parent=11 // pred_check_branch
          %226 = sbr.rel (%p224) target = $region36
        $region35: #{tpu_custom_call.1} parent=11 // pred_region
          _
        $region36: #{tpu_custom_call.1} parent=11 // pred_fallthru
          _
      $region12: #{tpu_custom_call.1} parent=5 // pred_fallthru
        _
      %p227 = scmp.lt.s32.totalorder %s16, 2
      // Predicated region
      $region37: #{tpu_custom_call.1} parent=5 // pred_check
        %p228 = pneg %p227
      $region38: #{tpu_custom_call.1} parent=5 // pred_check_branch
        %230 = sbr.rel (%p228) target = $region40
      $region39: #{tpu_custom_call.1} parent=5 // pred_region
        // Predicated region
        $region41: #{tpu_custom_call.1} parent=39 // pred_check
          %p231 = pneg %p36
        $region42: #{tpu_custom_call.1} parent=39 // pred_check_branch
          %233 = sbr.rel (%p231) target = $region44
        $region43: #{tpu_custom_call.1} parent=39 // pred_region
          %p234 = scmp.lt.s32.totalorder %s16, 1
          %s235 = scalar_select %p234, %s16, 1
          %s236 = smul.addr %s235, 8
          %s237 = scalar_lea.vmem %s0, %s236
        $region44: #{tpu_custom_call.1} parent=39 // pred_fallthru
          _
      $region40: #{tpu_custom_call.1} parent=5 // pred_fallthru
        _
      %p238 = scmp.le.s32.totalorder 1, %s16
      %p239 = scmp.lt.s32.totalorder %s16, 3
      %p240 = pnand %p238, %p239
      %p241 = pneg %p240
      // Predicated region
      $region45: #{tpu_custom_call.1} parent=5 // pred_check
        _
      $region46: #{tpu_custom_call.1} parent=5 // pred_check_branch
        %243 = sbr.rel (%p240) target = $region48
      $region47: #{tpu_custom_call.1} parent=5 // pred_region
        %s244 = ssub.s32 %s16, 1
        %p245 = scmp.lt.s32.totalorder %s21, 1
        %s246 = scalar_select %p245, %s21, 1
        %s247 = smul.addr %s246, 8
        %s248 = scalar_lea.vmem %s0, %s247
        %p249 = pneg %p42
        %p250 = pneg %p39
        %p251 = pneg %p63
        %p252 = pneg %p60
        %p253 = pneg %p84
        %p254 = pneg %p81
        %p255 = pneg %p105
        %p256 = pneg %p102
        %p257 = pneg %p126
        %p258 = pneg %p123
        %p259 = pneg %p147
        %p260 = pneg %p144
        %p261 = pneg %p168
        %p262 = pneg %p165
        %p263 = pneg %p194
        %p264 = pneg %p191
        %s265 = sand.u32 %s181, 1
        %s266 = scalar_lea.sflag [#allocation3], %s265
        %s267 = sand.u32 %s181, 1
        %s268 = smul.addr %s267, 8
        %s269 = scalar_lea.vmem [#allocation2], %s268
        %p270 = scmp.lt.s32.totalorder %s21, 1
        %s271 = scalar_select %p270, %s21, 1
        %s272 = smul.addr %s271, 8
        %s273 = scalar_lea.vmem %s0, %s272
        %v274 = vld [vmem:[%s273] sm:$0xff]
        %vm275 = vcmask 261120
        %v276 = vsel %vm275, %v274, 0.0
        %v277 = vrot.slane %v276, 4
        %v278 = vadd.f32 %v276, %v277
        %v279 = vrot.slane %v278, 2
        %v280 = vadd.f32 %v278, %v279
        %v281 = vrot.slane %v280, 1
        %v282 = vadd.f32 %v280, %v281
        %v283 = vrcp.pop 8.0
        %v284 = vmul.f32 %v282, %v283
        %v285 = vsub.f32 %v274, %v284
        %v286 = vmul.f32 %v285, %v285
        %v287 = vsel %vm275, %v286, 0.0
        %v288 = vrot.slane %v287, 4
        %v289 = vadd.f32 %v287, %v288
        %v290 = vrot.slane %v289, 2
        %v291 = vadd.f32 %v289, %v290
        %v292 = vrot.slane %v291, 1
        %v293 = vadd.f32 %v291, %v292
        %v294 = vmul.f32 %v293, %v283
        %v295 = vadd.f32 %v294, 1e-05
        %v296 = vrsqrt.pop %v295
        %v297 = vmul.f32 %v285, %v296
        %v298 = vld [vmem:[%s1] sm:$0xff]
        %v299 = vld [vmem:[%s1 + $0x8] sm:$0xff]
        %v300 = vld [vmem:[%s1 + $0x10] sm:$0xff]
        %v301 = vld [vmem:[%s1 + $0x18] sm:$0xff]
        %v303 = vsel %vm275, %v297, 0
        %305 = vmatprep.subr.mxu0 0.0
        %306 = vmatpush1.msra.mxu0 %v298
        %307 = vmatprep.subr.mxu0 0.0
        %308 = vmatpush1.msra.mxu0 %v299
        %309 = vmatprep.subr.mxu0 0.0
        %310 = vmatpush1.msra.mxu0 %v300
        %311 = vmatprep.subr.mxu0 0.0
        %312 = vmatpush1.msra.mxu0 %v301
        %313 = vmatprep.subr.mxu0 0.0
        %314 = vmatpush1.msra.mxu0 0.0
        %315 = vmatprep.subr.mxu0 0.0
        %316 = vmatpush1.msra.mxu0 0.0
        %317 = vmatprep.subr.mxu0 0.0
        %318 = vmatpush1.msra.mxu0 0.0
        %319 = vmatprep.subr.mxu0 0.0
        %320 = vmatpush1.msra.mxu0 0.0
        %321 = vmatprep.subr.mxu0 0.0
        %322 = vmatpush1.msra.mxu0 0.0
        %323 = vmatprep.subr.mxu0 0.0
        %324 = vmatpush1.msra.mxu0 0.0
        %325 = vmatprep.subr.mxu0 0.0
        %326 = vmatpush1.msra.mxu0 0.0
        %327 = vmatprep.subr.mxu0 0.0
        %328 = vmatpush1.msra.mxu0 0.0
        %329 = vmatprep.subr.mxu0 0.0
        %330 = vmatpush1.msra.mxu0 0.0
        %331 = vmatprep.subr.mxu0 0.0
        %332 = vmatpush1.msra.mxu0 0.0
        %333 = vmatprep.subr.mxu0 0.0
        %334 = vmatpush1.msra.mxu0 0.0
        %335 = vmatprep.subr.mxu0 0.0
        %336 = vmatpush1.msra.mxu0 0.0
        %337 = vmatprep.subr.mxu0 0.0
        %338 = vmatpush1.msra.mxu0 0.0
        %339 = vmatprep.subr.mxu0 0.0
        %340 = vmatpush1.msra.mxu0 0.0
        %341 = vmatprep.subr.mxu0 0.0
        %342 = vmatpush1.msra.mxu0 0.0
        %343 = vmatprep.subr.mxu0 0.0
        %344 = vmatpush1.msra.mxu0 0.0
        %345 = vmatprep.subr.mxu0 0.0
        %346 = vmatpush1.msra.mxu0 0.0
        %347 = vmatprep.subr.mxu0 0.0
        %348 = vmatpush1.msra.mxu0 0.0
        %349 = vmatprep.subr.mxu0 0.0
        %350 = vmatpush1.msra.mxu0 0.0
        %351 = vmatprep.subr.mxu0 0.0
        %352 = vmatpush1.msra.mxu0 0.0
        %353 = vmatprep.subr.mxu0 0.0
        %354 = vmatpush1.msra.mxu0 0.0
        %355 = vmatprep.subr.mxu0 0.0
        %356 = vmatpush1.msra.mxu0 0.0
        %357 = vmatprep.subr.mxu0 0.0
        %358 = vmatpush1.msra.mxu0 0.0
        %359 = vmatprep.subr.mxu0 0.0
        %360 = vmatpush1.msra.mxu0 0.0
        %361 = vmatprep.subr.mxu0 0.0
        %362 = vmatpush1.msra.mxu0 0.0
        %363 = vmatprep.subr.mxu0 0.0
        %364 = vmatpush1.msra.mxu0 0.0
        %365 = vmatprep.subr.mxu0 0.0
        %366 = vmatpush1.msra.mxu0 0.0
        %367 = vmatprep.subr.mxu0 0.0
        %368 = vmatpush1.msra.mxu0 0.0
        %369 = vmatprep.mubr.f32.mxu0 0.0
        %370 = vmatmul.mubr.f32.gmra.mrb[0].mxu0 %v303
        %v371 = vpop.f32.mrb[0].mxu0
        %v372 = vadd.f32 0.0, %v371
        %v373 = vpop.f32.mrb[0].mxu0
        %374 = vdwg.mxu0
        %v375 = vld [vmem:[%s2] sm:$0xff]
        %v376 = vld [vmem:[%s2 + $0x8] sm:$0xff]
        %v377 = vld [vmem:[%s2 + $0x10] sm:$0xff]
        %v378 = vld [vmem:[%s2 + $0x18] sm:$0xff]
        %v379 = vld [vmem:[%s2 + $0x20] sm:$0xff]
        %v380 = vld [vmem:[%s2 + $0x28] sm:$0xff]
        %v381 = vld [vmem:[%s2 + $0x30] sm:$0xff]
        %v382 = vld [vmem:[%s2 + $0x38] sm:$0xff]
        %vm383 = vcmask 523264
        %v385 = vsel %vm383, %v372, 0
        %387 = vmatprep.subr.mxu0 0.0
        %388 = vmatpush1.msra.mxu0 %v375
        %389 = vmatprep.subr.mxu0 0.0
        %390 = vmatpush1.msra.mxu0 %v376
        %391 = vmatprep.subr.mxu0 0.0
        %392 = vmatpush1.msra.mxu0 %v377
        %393 = vmatprep.subr.mxu0 0.0
        %394 = vmatpush1.msra.mxu0 %v378
        %395 = vmatprep.subr.mxu0 0.0
        %396 = vmatpush1.msra.mxu0 %v379
        %397 = vmatprep.subr.mxu0 0.0
        %398 = vmatpush1.msra.mxu0 %v380
        %399 = vmatprep.subr.mxu0 0.0
        %400 = vmatpush1.msra.mxu0 %v381
        %401 = vmatprep.subr.mxu0 0.0
        %402 = vmatpush1.msra.mxu0 %v382
        %403 = vmatprep.subr.mxu0 0.0
        %404 = vmatpush1.msra.mxu0 0.0
        %405 = vmatprep.subr.mxu0 0.0
        %406 = vmatpush1.msra.mxu0 0.0
        %407 = vmatprep.subr.mxu0 0.0
        %408 = vmatpush1.msra.mxu0 0.0
        %409 = vmatprep.subr.mxu0 0.0
        %410 = vmatpush1.msra.mxu0 0.0
        %411 = vmatprep.subr.mxu0 0.0
        %412 = vmatpush1.msra.mxu0 0.0
        %413 = vmatprep.subr.mxu0 0.0
        %414 = vmatpush1.msra.mxu0 0.0
        %415 = vmatprep.subr.mxu0 0.0
        %416 = vmatpush1.msra.mxu0 0.0
        %417 = vmatprep.subr.mxu0 0.0
        %418 = vmatpush1.msra.mxu0 0.0
        %419 = vmatprep.subr.mxu0 0.0
        %420 = vmatpush1.msra.mxu0 0.0
        %421 = vmatprep.subr.mxu0 0.0
        %422 = vmatpush1.msra.mxu0 0.0
        %423 = vmatprep.subr.mxu0 0.0
        %424 = vmatpush1.msra.mxu0 0.0
        %425 = vmatprep.subr.mxu0 0.0
        %426 = vmatpush1.msra.mxu0 0.0
        %427 = vmatprep.subr.mxu0 0.0
        %428 = vmatpush1.msra.mxu0 0.0
        %429 = vmatprep.subr.mxu0 0.0
        %430 = vmatpush1.msra.mxu0 0.0
        %431 = vmatprep.subr.mxu0 0.0
        %432 = vmatpush1.msra.mxu0 0.0
        %433 = vmatprep.subr.mxu0 0.0
        %434 = vmatpush1.msra.mxu0 0.0
        %435 = vmatprep.subr.mxu0 0.0
        %436 = vmatpush1.msra.mxu0 0.0
        %437 = vmatprep.subr.mxu0 0.0
        %438 = vmatpush1.msra.mxu0 0.0
        %439 = vmatprep.subr.mxu0 0.0
        %440 = vmatpush1.msra.mxu0 0.0
        %441 = vmatprep.subr.mxu0 0.0
        %442 = vmatpush1.msra.mxu0 0.0
        %443 = vmatprep.subr.mxu0 0.0
        %444 = vmatpush1.msra.mxu0 0.0
        %445 = vmatprep.subr.mxu0 0.0
        %446 = vmatpush1.msra.mxu0 0.0
        %447 = vmatprep.subr.mxu0 0.0
        %448 = vmatpush1.msra.mxu0 0.0
        %449 = vmatprep.subr.mxu0 0.0
        %450 = vmatpush1.msra.mxu0 0.0
        %451 = vmatprep.mubr.f32.mxu0 0.0
        %452 = vmatmul.mubr.f32.gmra.mrb[0].mxu0 %v385
        %v453 = vpop.f32.mrb[0].mxu0
        %v454 = vadd.f32 0.0, %v453
        %v455 = vpop.f32.mrb[0].mxu0
        %456 = vdwg.mxu0
        %458 = vrot.lane.b32.xlu0 %v454, 124
        %v459 = vpop.permute.xlu0 %458
        %461 = vxpose.xlu0.b32.start [1/16] %v459, 128
        %462 = vxpose.xlu0.b32.cont [2/16] 0.0, 128
        %463 = vxpose.xlu0.b32.cont [3/16] 0.0, 128
        %464 = vxpose.xlu0.b32.cont [4/16] 0.0, 128
        %465 = vxpose.xlu0.b32.cont [5/16] 0.0, 128
        %466 = vxpose.xlu0.b32.cont [6/16] 0.0, 128
        %467 = vxpose.xlu0.b32.cont [7/16] 0.0, 128
        %468 = vxpose.xlu0.b32.cont [8/16] 0.0, 128
        %469 = vxpose.xlu0.b32.cont [9/16] 0.0, 128
        %470 = vxpose.xlu0.b32.cont [10/16] 0.0, 128
        %471 = vxpose.xlu0.b32.cont [11/16] 0.0, 128
        %472 = vxpose.xlu0.b32.cont [12/16] 0.0, 128
        %473 = vxpose.xlu0.b32.cont [13/16] 0.0, 128
        %474 = vxpose.xlu0.b32.cont [14/16] 0.0, 128
        %475 = vxpose.xlu0.b32.cont [15/16] 0.0, 128
        %476 = vxpose.xlu0.b32.end [16/16] 0.0, 128
        %v477 = vpop.trf.xlu0
        %v478 = vpop.trf.xlu0
        %v479 = vpop.trf.xlu0
        %v480 = vpop.trf.xlu0
        %v481 = vpop.trf.xlu0
        %v482 = vpop.trf.xlu0
        %v483 = vpop.trf.xlu0
        %v484 = vpop.trf.xlu0
        %v485 = vpop.trf.xlu0
        %v486 = vpop.trf.xlu0
        %v487 = vpop.trf.xlu0
        %v488 = vpop.trf.xlu0
        %v489 = vpop.trf.xlu0
        %v490 = vpop.trf.xlu0
        %v491 = vpop.trf.xlu0
        %v492 = vpop.trf.xlu0
        %493 = vset.pattern.permute.xlu0 0
        %494 = vperm.xlu0 %493, %v454
        %v495 = vpop.permute.xlu0 %494
        %v497 = vlaneseq
        %v498 = vshrl.u32 %v497, 7
        %v499 = vsub.s32 0, %v498
        %v500 = vrot.slane %v477, %v499
        %v501 = vadd.f32 %v495, %v500
        %vm502 = vcmp.gt.f32.partialorder %v501, 0.0
        %v503 = vmul.f32 %v501, 0.2
        %v504 = vsel %vm502, %v501, %v503
        %vm505 = vcmask 64512
        %v506 = vsel %vm505, %v504, -inf
        %507 = vmax.xlane.f32.xlu0 %v506
        %v508 = vpop.xlane.xlu0 %507
        %v509 = vsub.f32 %v504, %v508
        %v510 = vmul.f32 %v509, 1.442695
        %v511 = vpow.pop %v510
        %v512 = vsel %vm505, %v511, 0.0
        %513 = vadd.xlane.f32.xlu0 %v512
        %v514 = vpop.xlane.xlu0 %513
        %v515 = vrcp.pop %v514
        %v516 = vmul.f32 %v511, %v515
        %v518 = vsel %vm505, %v516, 0
        %520 = vmatprep.subr.mxu0 0.0
        %521 = vmatpush1.msra.mxu0 %v372
        %522 = vmatprep.subr.mxu0 0.0
        %523 = vmatpush1.msra.mxu0 0.0
        %524 = vmatprep.subr.mxu0 0.0
        %525 = vmatpush1.msra.mxu0 0.0
        %526 = vmatprep.subr.mxu0 0.0
        %527 = vmatpush1.msra.mxu0 0.0
        %528 = vmatprep.subr.mxu0 0.0
        %529 = vmatpush1.msra.mxu0 0.0
        %530 = vmatprep.subr.mxu0 0.0
        %531 = vmatpush1.msra.mxu0 0.0
        %532 = vmatprep.subr.mxu0 0.0
        %533 = vmatpush1.msra.mxu0 0.0
        %534 = vmatprep.subr.mxu0 0.0
        %535 = vmatpush1.msra.mxu0 0.0
        %536 = vmatprep.subr.mxu0 0.0
        %537 = vmatpush1.msra.mxu0 0.0
        %538 = vmatprep.subr.mxu0 0.0
        %539 = vmatpush1.msra.mxu0 0.0
        %540 = vmatprep.subr.mxu0 0.0
        %541 = vmatpush1.msra.mxu0 0.0
        %542 = vmatprep.subr.mxu0 0.0
        %543 = vmatpush1.msra.mxu0 0.0
        %544 = vmatprep.subr.mxu0 0.0
        %545 = vmatpush1.msra.mxu0 0.0
        %546 = vmatprep.subr.mxu0 0.0
        %547 = vmatpush1.msra.mxu0 0.0
        %548 = vmatprep.subr.mxu0 0.0
        %549 = vmatpush1.msra.mxu0 0.0
        %550 = vmatprep.subr.mxu0 0.0
        %551 = vmatpush1.msra.mxu0 0.0
        %552 = vmatprep.subr.mxu0 0.0
        %553 = vmatpush1.msra.mxu0 0.0
        %554 = vmatprep.subr.mxu0 0.0
        %555 = vmatpush1.msra.mxu0 0.0
        %556 = vmatprep.subr.mxu0 0.0
        %557 = vmatpush1.msra.mxu0 0.0
        %558 = vmatprep.subr.mxu0 0.0
        %559 = vmatpush1.msra.mxu0 0.0
        %560 = vmatprep.subr.mxu0 0.0
        %561 = vmatpush1.msra.mxu0 0.0
        %562 = vmatprep.subr.mxu0 0.0
        %563 = vmatpush1.msra.mxu0 0.0
        %564 = vmatprep.subr.mxu0 0.0
        %565 = vmatpush1.msra.mxu0 0.0
        %566 = vmatprep.subr.mxu0 0.0
        %567 = vmatpush1.msra.mxu0 0.0
        %568 = vmatprep.subr.mxu0 0.0
        %569 = vmatpush1.msra.mxu0 0.0
        %570 = vmatprep.subr.mxu0 0.0
        %571 = vmatpush1.msra.mxu0 0.0
        %572 = vmatprep.subr.mxu0 0.0
        %573 = vmatpush1.msra.mxu0 0.0
        %574 = vmatprep.subr.mxu0 0.0
        %575 = vmatpush1.msra.mxu0 0.0
        %576 = vmatprep.subr.mxu0 0.0
        %577 = vmatpush1.msra.mxu0 0.0
        %578 = vmatprep.subr.mxu0 0.0
        %579 = vmatpush1.msra.mxu0 0.0
        %580 = vmatprep.subr.mxu0 0.0
        %581 = vmatpush1.msra.mxu0 0.0
        %582 = vmatprep.subr.mxu0 0.0
        %583 = vmatpush1.msra.mxu0 0.0
        %584 = vmatprep.mubr.f32.mxu0 0.0
        %585 = vmatmul.mubr.f32.gmra.mrb[0].mxu0 %v518
        %v586 = vpop.f32.mrb[0].mxu0
        %v587 = vadd.f32 0.0, %v586
        %v588 = vpop.f32.mrb[0].mxu0
        %589 = vdwg.mxu0
        %590 = vrot.lane.b32.xlu0 %v454, 123
        %v591 = vpop.permute.xlu0 %590
        %593 = vxpose.xlu0.b32.start [1/16] %v591, 128
        %594 = vxpose.xlu0.b32.cont [2/16] 0.0, 128
        %595 = vxpose.xlu0.b32.cont [3/16] 0.0, 128
        %596 = vxpose.xlu0.b32.cont [4/16] 0.0, 128
        %597 = vxpose.xlu0.b32.cont [5/16] 0.0, 128
        %598 = vxpose.xlu0.b32.cont [6/16] 0.0, 128
        %599 = vxpose.xlu0.b32.cont [7/16] 0.0, 128
        %600 = vxpose.xlu0.b32.cont [8/16] 0.0, 128
        %601 = vxpose.xlu0.b32.cont [9/16] 0.0, 128
        %602 = vxpose.xlu0.b32.cont [10/16] 0.0, 128
        %603 = vxpose.xlu0.b32.cont [11/16] 0.0, 128
        %604 = vxpose.xlu0.b32.cont [12/16] 0.0, 128
        %605 = vxpose.xlu0.b32.cont [13/16] 0.0, 128
        %606 = vxpose.xlu0.b32.cont [14/16] 0.0, 128
        %607 = vxpose.xlu0.b32.cont [15/16] 0.0, 128
        %608 = vxpose.xlu0.b32.end [16/16] 0.0, 128
        %v609 = vpop.trf.xlu0
        %v610 = vpop.trf.xlu0
        %v611 = vpop.trf.xlu0
        %v612 = vpop.trf.xlu0
        %v613 = vpop.trf.xlu0
        %v614 = vpop.trf.xlu0
        %v615 = vpop.trf.xlu0
        %v616 = vpop.trf.xlu0
        %v617 = vpop.trf.xlu0
        %v618 = vpop.trf.xlu0
        %v619 = vpop.trf.xlu0
        %v620 = vpop.trf.xlu0
        %v621 = vpop.trf.xlu0
        %v622 = vpop.trf.xlu0
        %v623 = vpop.trf.xlu0
        %v624 = vpop.trf.xlu0
        %625 = vset.pattern.permute.xlu0 1
        %626 = vperm.xlu0 %625, %v454
        %v627 = vpop.permute.xlu0 %626
        %v629 = vlaneseq
        %v630 = vshrl.u32 %v629, 7
        %v631 = vsub.s32 0, %v630
        %v632 = vrot.slane %v609, %v631
        %v633 = vadd.f32 %v627, %v632
        %vm634 = vcmp.gt.f32.partialorder %v633, 0.0
        %v635 = vmul.f32 %v633, 0.2
        %v636 = vsel %vm634, %v633, %v635
        %v637 = vsel %vm505, %v636, -inf
        %638 = vmax.xlane.f32.xlu0 %v637
        %v639 = vpop.xlane.xlu0 %638
        %v640 = vsub.f32 %v636, %v639
        %v641 = vmul.f32 %v640, 1.442695
        %v642 = vpow.pop %v641
        %v643 = vsel %vm505, %v642, 0.0
        %644 = vadd.xlane.f32.xlu0 %v643
        %v645 = vpop.xlane.xlu0 %644
        %v646 = vrcp.pop %v645
        %v647 = vmul.f32 %v642, %v646
        %648 = vrot.lane.b32.xlu0 %v372, 112
        %v649 = vpop.permute.xlu0 %648
        %v652 = vsel %vm505, %v647, 0
        %654 = vmatprep.subr.mxu0 0.0
        %655 = vmatpush1.msra.mxu0 %v649
        %656 = vmatprep.subr.mxu0 0.0
        %657 = vmatpush1.msra.mxu0 0.0
        %658 = vmatprep.subr.mxu0 0.0
        %659 = vmatpush1.msra.mxu0 0.0
        %660 = vmatprep.subr.mxu0 0.0
        %661 = vmatpush1.msra.mxu0 0.0
        %662 = vmatprep.subr.mxu0 0.0
        %663 = vmatpush1.msra.mxu0 0.0
        %664 = vmatprep.subr.mxu0 0.0
        %665 = vmatpush1.msra.mxu0 0.0
        %666 = vmatprep.subr.mxu0 0.0
        %667 = vmatpush1.msra.mxu0 0.0
        %668 = vmatprep.subr.mxu0 0.0
        %669 = vmatpush1.msra.mxu0 0.0
        %670 = vmatprep.subr.mxu0 0.0
        %671 = vmatpush1.msra.mxu0 0.0
        %672 = vmatprep.subr.mxu0 0.0
        %673 = vmatpush1.msra.mxu0 0.0
        %674 = vmatprep.subr.mxu0 0.0
        %675 = vmatpush1.msra.mxu0 0.0
        %676 = vmatprep.subr.mxu0 0.0
        %677 = vmatpush1.msra.mxu0 0.0
        %678 = vmatprep.subr.mxu0 0.0
        %679 = vmatpush1.msra.mxu0 0.0
        %680 = vmatprep.subr.mxu0 0.0
        %681 = vmatpush1.msra.mxu0 0.0
        %682 = vmatprep.subr.mxu0 0.0
        %683 = vmatpush1.msra.mxu0 0.0
        %684 = vmatprep.subr.mxu0 0.0
        %685 = vmatpush1.msra.mxu0 0.0
        %686 = vmatprep.subr.mxu0 0.0
        %687 = vmatpush1.msra.mxu0 0.0
        %688 = vmatprep.subr.mxu0 0.0
        %689 = vmatpush1.msra.mxu0 0.0
        %690 = vmatprep.subr.mxu0 0.0
        %691 = vmatpush1.msra.mxu0 0.0
        %692 = vmatprep.subr.mxu0 0.0
        %693 = vmatpush1.msra.mxu0 0.0
        %694 = vmatprep.subr.mxu0 0.0
        %695 = vmatpush1.msra.mxu0 0.0
        %696 = vmatprep.subr.mxu0 0.0
        %697 = vmatpush1.msra.mxu0 0.0
        %698 = vmatprep.subr.mxu0 0.0
        %699 = vmatpush1.msra.mxu0 0.0
        %700 = vmatprep.subr.mxu0 0.0
        %701 = vmatpush1.msra.mxu0 0.0
        %702 = vmatprep.subr.mxu0 0.0
        %703 = vmatpush1.msra.mxu0 0.0
        %704 = vmatprep.subr.mxu0 0.0
        %705 = vmatpush1.msra.mxu0 0.0
        %706 = vmatprep.subr.mxu0 0.0
        %707 = vmatpush1.msra.mxu0 0.0
        %708 = vmatprep.subr.mxu0 0.0
        %709 = vmatpush1.msra.mxu0 0.0
        %710 = vmatprep.subr.mxu0 0.0
        %711 = vmatpush1.msra.mxu0 0.0
        %712 = vmatprep.subr.mxu0 0.0
        %713 = vmatpush1.msra.mxu0 0.0
        %714 = vmatprep.subr.mxu0 0.0
        %715 = vmatpush1.msra.mxu0 0.0
        %716 = vmatprep.subr.mxu0 0.0
        %717 = vmatpush1.msra.mxu0 0.0
        %718 = vmatprep.mubr.f32.mxu0 0.0
        %719 = vmatmul.mubr.f32.gmra.mrb[0].mxu0 %v652
        %v720 = vpop.f32.mrb[0].mxu0
        %v721 = vadd.f32 0.0, %v720
        %v722 = vpop.f32.mrb[0].mxu0
        %723 = vdwg.mxu0
        %724 = vrot.lane.b32.xlu0 %v454, 122
        %v725 = vpop.permute.xlu0 %724
        %727 = vxpose.xlu0.b32.start [1/16] %v725, 128
        %728 = vxpose.xlu0.b32.cont [2/16] 0.0, 128
        %729 = vxpose.xlu0.b32.cont [3/16] 0.0, 128
        %730 = vxpose.xlu0.b32.cont [4/16] 0.0, 128
        %731 = vxpose.xlu0.b32.cont [5/16] 0.0, 128
        %732 = vxpose.xlu0.b32.cont [6/16] 0.0, 128
        %733 = vxpose.xlu0.b32.cont [7/16] 0.0, 128
        %734 = vxpose.xlu0.b32.cont [8/16] 0.0, 128
        %735 = vxpose.xlu0.b32.cont [9/16] 0.0, 128
        %736 = vxpose.xlu0.b32.cont [10/16] 0.0, 128
        %737 = vxpose.xlu0.b32.cont [11/16] 0.0, 128
        %738 = vxpose.xlu0.b32.cont [12/16] 0.0, 128
        %739 = vxpose.xlu0.b32.cont [13/16] 0.0, 128
        %740 = vxpose.xlu0.b32.cont [14/16] 0.0, 128
        %741 = vxpose.xlu0.b32.cont [15/16] 0.0, 128
        %742 = vxpose.xlu0.b32.end [16/16] 0.0, 128
        %v743 = vpop.trf.xlu0
        %v744 = vpop.trf.xlu0
        %v745 = vpop.trf.xlu0
        %v746 = vpop.trf.xlu0
        %v747 = vpop.trf.xlu0
        %v748 = vpop.trf.xlu0
        %v749 = vpop.trf.xlu0
        %v750 = vpop.trf.xlu0
        %v751 = vpop.trf.xlu0
        %v752 = vpop.trf.xlu0
        %v753 = vpop.trf.xlu0
        %v754 = vpop.trf.xlu0
        %v755 = vpop.trf.xlu0
        %v756 = vpop.trf.xlu0
        %v757 = vpop.trf.xlu0
        %v758 = vpop.trf.xlu0
        %759 = vset.pattern.permute.xlu0 2
        %760 = vperm.xlu0 %759, %v454
        %v761 = vpop.permute.xlu0 %760
        %v763 = vlaneseq
        %v764 = vshrl.u32 %v763, 7
        %v765 = vsub.s32 0, %v764
        %v766 = vrot.slane %v743, %v765
        %v767 = vadd.f32 %v761, %v766
        %vm768 = vcmp.gt.f32.partialorder %v767, 0.0
        %v769 = vmul.f32 %v767, 0.2
        %v770 = vsel %vm768, %v767, %v769
        %v771 = vsel %vm505, %v770, -inf
        %772 = vmax.xlane.f32.xlu0 %v771
        %v773 = vpop.xlane.xlu0 %772
        %v774 = vsub.f32 %v770, %v773
        %v775 = vmul.f32 %v774, 1.442695
        %v776 = vpow.pop %v775
        %v777 = vsel %vm505, %v776, 0.0
        %778 = vadd.xlane.f32.xlu0 %v777
        %v779 = vpop.xlane.xlu0 %778
        %v780 = vrcp.pop %v779
        %v781 = vmul.f32 %v776, %v780
        %782 = vrot.lane.b32.xlu0 %v372, 96
        %v783 = vpop.permute.xlu0 %782
        %v786 = vsel %vm505, %v781, 0
        %788 = vmatprep.subr.mxu0 0.0
        %789 = vmatpush1.msra.mxu0 %v783
        %790 = vmatprep.subr.mxu0 0.0
        %791 = vmatpush1.msra.mxu0 0.0
        %792 = vmatprep.subr.mxu0 0.0
        %793 = vmatpush1.msra.mxu0 0.0
        %794 = vmatprep.subr.mxu0 0.0
        %795 = vmatpush1.msra.mxu0 0.0
        %796 = vmatprep.subr.mxu0 0.0
        %797 = vmatpush1.msra.mxu0 0.0
        %798 = vmatprep.subr.mxu0 0.0
        %799 = vmatpush1.msra.mxu0 0.0
        %800 = vmatprep.subr.mxu0 0.0
        %801 = vmatpush1.msra.mxu0 0.0
        %802 = vmatprep.subr.mxu0 0.0
        %803 = vmatpush1.msra.mxu0 0.0
        %804 = vmatprep.subr.mxu0 0.0
        %805 = vmatpush1.msra.mxu0 0.0
        %806 = vmatprep.subr.mxu0 0.0
        %807 = vmatpush1.msra.mxu0 0.0
        %808 = vmatprep.subr.mxu0 0.0
        %809 = vmatpush1.msra.mxu0 0.0
        %810 = vmatprep.subr.mxu0 0.0
        %811 = vmatpush1.msra.mxu0 0.0
        %812 = vmatprep.subr.mxu0 0.0
        %813 = vmatpush1.msra.mxu0 0.0
        %814 = vmatprep.subr.mxu0 0.0
        %815 = vmatpush1.msra.mxu0 0.0
        %816 = vmatprep.subr.mxu0 0.0
        %817 = vmatpush1.msra.mxu0 0.0
        %818 = vmatprep.subr.mxu0 0.0
        %819 = vmatpush1.msra.mxu0 0.0
        %820 = vmatprep.subr.mxu0 0.0
        %821 = vmatpush1.msra.mxu0 0.0
        %822 = vmatprep.subr.mxu0 0.0
        %823 = vmatpush1.msra.mxu0 0.0
        %824 = vmatprep.subr.mxu0 0.0
        %825 = vmatpush1.msra.mxu0 0.0
        %826 = vmatprep.subr.mxu0 0.0
        %827 = vmatpush1.msra.mxu0 0.0
        %828 = vmatprep.subr.mxu0 0.0
        %829 = vmatpush1.msra.mxu0 0.0
        %830 = vmatprep.subr.mxu0 0.0
        %831 = vmatpush1.msra.mxu0 0.0
        %832 = vmatprep.subr.mxu0 0.0
        %833 = vmatpush1.msra.mxu0 0.0
        %834 = vmatprep.subr.mxu0 0.0
        %835 = vmatpush1.msra.mxu0 0.0
        %836 = vmatprep.subr.mxu0 0.0
        %837 = vmatpush1.msra.mxu0 0.0
        %838 = vmatprep.subr.mxu0 0.0
        %839 = vmatpush1.msra.mxu0 0.0
        %840 = vmatprep.subr.mxu0 0.0
        %841 = vmatpush1.msra.mxu0 0.0
        %842 = vmatprep.subr.mxu0 0.0
        %843 = vmatpush1.msra.mxu0 0.0
        %844 = vmatprep.subr.mxu0 0.0
        %845 = vmatpush1.msra.mxu0 0.0
        %846 = vmatprep.subr.mxu0 0.0
        %847 = vmatpush1.msra.mxu0 0.0
        %848 = vmatprep.subr.mxu0 0.0
        %849 = vmatpush1.msra.mxu0 0.0
        %850 = vmatprep.subr.mxu0 0.0
        %851 = vmatpush1.msra.mxu0 0.0
        %852 = vmatprep.mubr.f32.mxu0 0.0
        %853 = vmatmul.mubr.f32.gmra.mrb[0].mxu0 %v786
        %v854 = vpop.f32.mrb[0].mxu0
        %v855 = vadd.f32 0.0, %v854
        %v856 = vpop.f32.mrb[0].mxu0
        %857 = vdwg.mxu0
        %858 = vrot.lane.b32.xlu0 %v454, 121
        %v859 = vpop.permute.xlu0 %858
        %861 = vxpose.xlu0.b32.start [1/16] %v859, 128
        %862 = vxpose.xlu0.b32.cont [2/16] 0.0, 128
        %863 = vxpose.xlu0.b32.cont [3/16] 0.0, 128
        %864 = vxpose.xlu0.b32.cont [4/16] 0.0, 128
        %865 = vxpose.xlu0.b32.cont [5/16] 0.0, 128
        %866 = vxpose.xlu0.b32.cont [6/16] 0.0, 128
        %867 = vxpose.xlu0.b32.cont [7/16] 0.0, 128
        %868 = vxpose.xlu0.b32.cont [8/16] 0.0, 128
        %869 = vxpose.xlu0.b32.cont [9/16] 0.0, 128
        %870 = vxpose.xlu0.b32.cont [10/16] 0.0, 128
        %871 = vxpose.xlu0.b32.cont [11/16] 0.0, 128
        %872 = vxpose.xlu0.b32.cont [12/16] 0.0, 128
        %873 = vxpose.xlu0.b32.cont [13/16] 0.0, 128
        %874 = vxpose.xlu0.b32.cont [14/16] 0.0, 128
        %875 = vxpose.xlu0.b32.cont [15/16] 0.0, 128
        %876 = vxpose.xlu0.b32.end [16/16] 0.0, 128
        %v877 = vpop.trf.xlu0
        %v878 = vpop.trf.xlu0
        %v879 = vpop.trf.xlu0
        %v880 = vpop.trf.xlu0
        %v881 = vpop.trf.xlu0
        %v882 = vpop.trf.xlu0
        %v883 = vpop.trf.xlu0
        %v884 = vpop.trf.xlu0
        %v885 = vpop.trf.xlu0
        %v886 = vpop.trf.xlu0
        %v887 = vpop.trf.xlu0
        %v888 = vpop.trf.xlu0
        %v889 = vpop.trf.xlu0
        %v890 = vpop.trf.xlu0
        %v891 = vpop.trf.xlu0
        %v892 = vpop.trf.xlu0
        %893 = vset.pattern.permute.xlu0 3
        %894 = vperm.xlu0 %893, %v454
        %v895 = vpop.permute.xlu0 %894
        %v897 = vlaneseq
        %v898 = vshrl.u32 %v897, 7
        %v899 = vsub.s32 0, %v898
        %v900 = vrot.slane %v877, %v899
        %v901 = vadd.f32 %v895, %v900
        %vm902 = vcmp.gt.f32.partialorder %v901, 0.0
        %v903 = vmul.f32 %v901, 0.2
        %v904 = vsel %vm902, %v901, %v903
        %v905 = vsel %vm505, %v904, -inf
        %906 = vmax.xlane.f32.xlu0 %v905
        %v907 = vpop.xlane.xlu0 %906
        %v908 = vsub.f32 %v904, %v907
        %v909 = vmul.f32 %v908, 1.442695
        %v910 = vpow.pop %v909
        %v911 = vsel %vm505, %v910, 0.0
        %912 = vadd.xlane.f32.xlu0 %v911
        %v913 = vpop.xlane.xlu0 %912
        %v914 = vrcp.pop %v913
        %v915 = vmul.f32 %v910, %v914
        %916 = vrot.lane.b32.xlu0 %v372, 80
        %v917 = vpop.permute.xlu0 %916
        %v920 = vsel %vm505, %v915, 0
        %922 = vmatprep.subr.mxu0 0.0
        %923 = vmatpush1.msra.mxu0 %v917
        %924 = vmatprep.subr.mxu0 0.0
        %925 = vmatpush1.msra.mxu0 0.0
        %926 = vmatprep.subr.mxu0 0.0
        %927 = vmatpush1.msra.mxu0 0.0
        %928 = vmatprep.subr.mxu0 0.0
        %929 = vmatpush1.msra.mxu0 0.0
        %930 = vmatprep.subr.mxu0 0.0
        %931 = vmatpush1.msra.mxu0 0.0
        %932 = vmatprep.subr.mxu0 0.0
        %933 = vmatpush1.msra.mxu0 0.0
        %934 = vmatprep.subr.mxu0 0.0
        %935 = vmatpush1.msra.mxu0 0.0
        %936 = vmatprep.subr.mxu0 0.0
        %937 = vmatpush1.msra.mxu0 0.0
        %938 = vmatprep.subr.mxu0 0.0
        %939 = vmatpush1.msra.mxu0 0.0
        %940 = vmatprep.subr.mxu0 0.0
        %941 = vmatpush1.msra.mxu0 0.0
        %942 = vmatprep.subr.mxu0 0.0
        %943 = vmatpush1.msra.mxu0 0.0
        %944 = vmatprep.subr.mxu0 0.0
        %945 = vmatpush1.msra.mxu0 0.0
        %946 = vmatprep.subr.mxu0 0.0
        %947 = vmatpush1.msra.mxu0 0.0
        %948 = vmatprep.subr.mxu0 0.0
        %949 = vmatpush1.msra.mxu0 0.0
        %950 = vmatprep.subr.mxu0 0.0
        %951 = vmatpush1.msra.mxu0 0.0
        %952 = vmatprep.subr.mxu0 0.0
        %953 = vmatpush1.msra.mxu0 0.0
        %954 = vmatprep.subr.mxu0 0.0
        %955 = vmatpush1.msra.mxu0 0.0
        %956 = vmatprep.subr.mxu0 0.0
        %957 = vmatpush1.msra.mxu0 0.0
        %958 = vmatprep.subr.mxu0 0.0
        %959 = vmatpush1.msra.mxu0 0.0
        %960 = vmatprep.subr.mxu0 0.0
        %961 = vmatpush1.msra.mxu0 0.0
        %962 = vmatprep.subr.mxu0 0.0
        %963 = vmatpush1.msra.mxu0 0.0
        %964 = vmatprep.subr.mxu0 0.0
        %965 = vmatpush1.msra.mxu0 0.0
        %966 = vmatprep.subr.mxu0 0.0
        %967 = vmatpush1.msra.mxu0 0.0
        %968 = vmatprep.subr.mxu0 0.0
        %969 = vmatpush1.msra.mxu0 0.0
        %970 = vmatprep.subr.mxu0 0.0
        %971 = vmatpush1.msra.mxu0 0.0
        %972 = vmatprep.subr.mxu0 0.0
        %973 = vmatpush1.msra.mxu0 0.0
        %974 = vmatprep.subr.mxu0 0.0
        %975 = vmatpush1.msra.mxu0 0.0
        %976 = vmatprep.subr.mxu0 0.0
        %977 = vmatpush1.msra.mxu0 0.0
        %978 = vmatprep.subr.mxu0 0.0
        %979 = vmatpush1.msra.mxu0 0.0
        %980 = vmatprep.subr.mxu0 0.0
        %981 = vmatpush1.msra.mxu0 0.0
        %982 = vmatprep.subr.mxu0 0.0
        %983 = vmatpush1.msra.mxu0 0.0
        %984 = vmatprep.subr.mxu0 0.0
        %985 = vmatpush1.msra.mxu0 0.0
        %986 = vmatprep.mubr.f32.mxu0 0.0
        %987 = vmatmul.mubr.f32.gmra.mrb[0].mxu0 %v920
        %v988 = vpop.f32.mrb[0].mxu0
        %v989 = vadd.f32 0.0, %v988
        %v990 = vpop.f32.mrb[0].mxu0
        %991 = vdwg.mxu0
        %993 = vrot.lane.b32.xlu0 %v721, 16
        %v994 = vpop.permute.xlu0 %993
        %997 = vrot.lane.b32.xlu0 %v855, 32
        %v998 = vpop.permute.xlu0 %997
        %1001 = vrot.lane.b32.xlu0 %v989, 48
        %v1002 = vpop.permute.xlu0 %1001
        %vm1004 = vcmask 130048
        %v1005 = vsel %vm1004, %v587, %v994
        %v1006 = vsel %vm275, %v1005, %v998
        %vm1007 = vcmask 392192
        %v1008 = vsel %vm1007, %v1006, %v1002
        %v1009 = vld [vmem:[%s3] sm:$0x1]
        %v1011 = vlaneseq
        %v1012 = vshrl.u32 %v1011, 7
        %v1013 = vsub.s32 0, %v1012
        %v1014 = vrot.slane %v1009, %v1013
        %v1016 = vadd.f32 %v1008, %v1014
        %vm1017 = vcmp.gt.f32.partialorder %v1016, 0.0
        %v1018 = vmin.f32 %v1016, 0.0
        %v1019 = vmul.f32 %v1018, 1.442695
        %v1020 = vpow.pop %v1019
        %v1021 = vsub.f32 %v1020, 1.0
        %v1022 = vsel %vm1017, %v1016, %v1021
        %v1023 = vsel %vm383, %v1022, 0.0
        %v1024 = vrot.slane %v1023, 4
        %v1025 = vadd.f32 %v1023, %v1024
        %v1026 = vrot.slane %v1025, 2
        %v1027 = vadd.f32 %v1025, %v1026
        %v1028 = vrot.slane %v1027, 1
        %v1029 = vadd.f32 %v1027, %v1028
        %v1030 = vmul.f32 %v1029, %v283
        %v1031 = vsub.f32 %v1022, %v1030
        %v1032 = vmul.f32 %v1031, %v1031
        %v1033 = vsel %vm383, %v1032, 0.0
        %v1034 = vrot.slane %v1033, 4
        %v1035 = vadd.f32 %v1033, %v1034
        %v1036 = vrot.slane %v1035, 2
        %v1037 = vadd.f32 %v1035, %v1036
        %v1038 = vrot.slane %v1037, 1
        %v1039 = vadd.f32 %v1037, %v1038
        %v1040 = vmul.f32 %v1039, %v283
        %v1041 = vadd.f32 %v1040, 1e-05
        %v1042 = vrsqrt.pop %v1041
        %v1043 = vmul.f32 %v1031, %v1042
        %v1044 = vld [vmem:[%s4] sm:$0xff]
        %v1045 = vld [vmem:[%s4 + $0x8] sm:$0xff]
        %v1046 = vld [vmem:[%s4 + $0x10] sm:$0xff]
        %v1047 = vld [vmem:[%s4 + $0x18] sm:$0xff]
        %v1048 = vld [vmem:[%s4 + $0x20] sm:$0xff]
        %v1049 = vld [vmem:[%s4 + $0x28] sm:$0xff]
        %v1050 = vld [vmem:[%s4 + $0x30] sm:$0xff]
        %v1051 = vld [vmem:[%s4 + $0x38] sm:$0xff]
        %v1053 = vsel %vm383, %v1043, 0
        %1055 = vmatprep.subr.mxu0 0.0
        %1056 = vmatpush1.msra.mxu0 %v1044
        %1057 = vmatprep.subr.mxu0 0.0
        %1058 = vmatpush1.msra.mxu0 %v1045
        %1059 = vmatprep.subr.mxu0 0.0
        %1060 = vmatpush1.msra.mxu0 %v1046
        %1061 = vmatprep.subr.mxu0 0.0
        %1062 = vmatpush1.msra.mxu0 %v1047
        %1063 = vmatprep.subr.mxu0 0.0
        %1064 = vmatpush1.msra.mxu0 %v1048
        %1065 = vmatprep.subr.mxu0 0.0
        %1066 = vmatpush1.msra.mxu0 %v1049
        %1067 = vmatprep.subr.mxu0 0.0
        %1068 = vmatpush1.msra.mxu0 %v1050
        %1069 = vmatprep.subr.mxu0 0.0
        %1070 = vmatpush1.msra.mxu0 %v1051
        %1071 = vmatprep.subr.mxu0 0.0
        %1072 = vmatpush1.msra.mxu0 0.0
        %1073 = vmatprep.subr.mxu0 0.0
        %1074 = vmatpush1.msra.mxu0 0.0
        %1075 = vmatprep.subr.mxu0 0.0
        %1076 = vmatpush1.msra.mxu0 0.0
        %1077 = vmatprep.subr.mxu0 0.0
        %1078 = vmatpush1.msra.mxu0 0.0
        %1079 = vmatprep.subr.mxu0 0.0
        %1080 = vmatpush1.msra.mxu0 0.0
        %1081 = vmatprep.subr.mxu0 0.0
        %1082 = vmatpush1.msra.mxu0 0.0
        %1083 = vmatprep.subr.mxu0 0.0
        %1084 = vmatpush1.msra.mxu0 0.0
        %1085 = vmatprep.subr.mxu0 0.0
        %1086 = vmatpush1.msra.mxu0 0.0
        %1087 = vmatprep.subr.mxu0 0.0
        %1088 = vmatpush1.msra.mxu0 0.0
        %1089 = vmatprep.subr.mxu0 0.0
        %1090 = vmatpush1.msra.mxu0 0.0
        %1091 = vmatprep.subr.mxu0 0.0
        %1092 = vmatpush1.msra.mxu0 0.0
        %1093 = vmatprep.subr.mxu0 0.0
        %1094 = vmatpush1.msra.mxu0 0.0
        %1095 = vmatprep.subr.mxu0 0.0
        %1096 = vmatpush1.msra.mxu0 0.0
        %1097 = vmatprep.subr.mxu0 0.0
        %1098 = vmatpush1.msra.mxu0 0.0
        %1099 = vmatprep.subr.mxu0 0.0
        %1100 = vmatpush1.msra.mxu0 0.0
        %1101 = vmatprep.subr.mxu0 0.0
        %1102 = vmatpush1.msra.mxu0 0.0
        %1103 = vmatprep.subr.mxu0 0.0
        %1104 = vmatpush1.msra.mxu0 0.0
        %1105 = vmatprep.subr.mxu0 0.0
        %1106 = vmatpush1.msra.mxu0 0.0
        %1107 = vmatprep.subr.mxu0 0.0
        %1108 = vmatpush1.msra.mxu0 0.0
        %1109 = vmatprep.subr.mxu0 0.0
        %1110 = vmatpush1.msra.mxu0 0.0
        %1111 = vmatprep.subr.mxu0 0.0
        %1112 = vmatpush1.msra.mxu0 0.0
        %1113 = vmatprep.subr.mxu0 0.0
        %1114 = vmatpush1.msra.mxu0 0.0
        %1115 = vmatprep.subr.mxu0 0.0
        %1116 = vmatpush1.msra.mxu0 0.0
        %1117 = vmatprep.subr.mxu0 0.0
        %1118 = vmatpush1.msra.mxu0 0.0
        %1119 = vmatprep.mubr.f32.mxu0 0.0
        %1120 = vmatmul.mubr.f32.gmra.mrb[0].mxu0 %v1053
        %v1121 = vpop.f32.mrb[0].mxu0
        %v1122 = vadd.f32 0.0, %v1121
        %v1123 = vpop.f32.mrb[0].mxu0
        %1124 = vdwg.mxu0
        %v1125 = vld [vmem:[%s5] sm:$0xff]
        %v1126 = vld [vmem:[%s5 + $0x8] sm:$0xff]
        %v1127 = vld [vmem:[%s5 + $0x10] sm:$0xff]
        %v1128 = vld [vmem:[%s5 + $0x18] sm:$0xff]
        %v1130 = vsel %vm275, %v1122, 0
        %1132 = vmatprep.subr.mxu0 0.0
        %1133 = vmatpush1.msra.mxu0 %v1125
        %1134 = vmatprep.subr.mxu0 0.0
        %1135 = vmatpush1.msra.mxu0 %v1126
        %1136 = vmatprep.subr.mxu0 0.0
        %1137 = vmatpush1.msra.mxu0 %v1127
        %1138 = vmatprep.subr.mxu0 0.0
        %1139 = vmatpush1.msra.mxu0 %v1128
        %1140 = vmatprep.subr.mxu0 0.0
        %1141 = vmatpush1.msra.mxu0 0.0
        %1142 = vmatprep.subr.mxu0 0.0
        %1143 = vmatpush1.msra.mxu0 0.0
        %1144 = vmatprep.subr.mxu0 0.0
        %1145 = vmatpush1.msra.mxu0 0.0
        %1146 = vmatprep.subr.mxu0 0.0
        %1147 = vmatpush1.msra.mxu0 0.0
        %1148 = vmatprep.subr.mxu0 0.0
        %1149 = vmatpush1.msra.mxu0 0.0
        %1150 = vmatprep.subr.mxu0 0.0
        %1151 = vmatpush1.msra.mxu0 0.0
        %1152 = vmatprep.subr.mxu0 0.0
        %1153 = vmatpush1.msra.mxu0 0.0
        %1154 = vmatprep.subr.mxu0 0.0
        %1155 = vmatpush1.msra.mxu0 0.0
        %1156 = vmatprep.subr.mxu0 0.0
        %1157 = vmatpush1.msra.mxu0 0.0
        %1158 = vmatprep.subr.mxu0 0.0
        %1159 = vmatpush1.msra.mxu0 0.0
        %1160 = vmatprep.subr.mxu0 0.0
        %1161 = vmatpush1.msra.mxu0 0.0
        %1162 = vmatprep.subr.mxu0 0.0
        %1163 = vmatpush1.msra.mxu0 0.0
        %1164 = vmatprep.subr.mxu0 0.0
        %1165 = vmatpush1.msra.mxu0 0.0
        %1166 = vmatprep.subr.mxu0 0.0
        %1167 = vmatpush1.msra.mxu0 0.0
        %1168 = vmatprep.subr.mxu0 0.0
        %1169 = vmatpush1.msra.mxu0 0.0
        %1170 = vmatprep.subr.mxu0 0.0
        %1171 = vmatpush1.msra.mxu0 0.0
        %1172 = vmatprep.subr.mxu0 0.0
        %1173 = vmatpush1.msra.mxu0 0.0
        %1174 = vmatprep.subr.mxu0 0.0
        %1175 = vmatpush1.msra.mxu0 0.0
        %1176 = vmatprep.subr.mxu0 0.0
        %1177 = vmatpush1.msra.mxu0 0.0
        %1178 = vmatprep.subr.mxu0 0.0
        %1179 = vmatpush1.msra.mxu0 0.0
        %1180 = vmatprep.subr.mxu0 0.0
        %1181 = vmatpush1.msra.mxu0 0.0
        %1182 = vmatprep.subr.mxu0 0.0
        %1183 = vmatpush1.msra.mxu0 0.0
        %1184 = vmatprep.subr.mxu0 0.0
        %1185 = vmatpush1.msra.mxu0 0.0
        %1186 = vmatprep.subr.mxu0 0.0
        %1187 = vmatpush1.msra.mxu0 0.0
        %1188 = vmatprep.subr.mxu0 0.0
        %1189 = vmatpush1.msra.mxu0 0.0
        %1190 = vmatprep.subr.mxu0 0.0
        %1191 = vmatpush1.msra.mxu0 0.0
        %1192 = vmatprep.subr.mxu0 0.0
        %1193 = vmatpush1.msra.mxu0 0.0
        %1194 = vmatprep.subr.mxu0 0.0
        %1195 = vmatpush1.msra.mxu0 0.0
        %1196 = vmatprep.mubr.f32.mxu0 0.0
        %1197 = vmatmul.mubr.f32.gmra.mrb[0].mxu0 %v1130
        %v1198 = vpop.f32.mrb[0].mxu0
        %v1199 = vadd.f32 0.0, %v1198
        %v1200 = vpop.f32.mrb[0].mxu0
        %1201 = vdwg.mxu0
        %1203 = vrot.lane.b32.xlu0 %v1199, 127
        %v1204 = vpop.permute.xlu0 %1203
        %1206 = vxpose.xlu0.b32.start [1/16] %v1204, 128
        %1207 = vxpose.xlu0.b32.cont [2/16] 0.0, 128
        %1208 = vxpose.xlu0.b32.cont [3/16] 0.0, 128
        %1209 = vxpose.xlu0.b32.cont [4/16] 0.0, 128
        %1210 = vxpose.xlu0.b32.cont [5/16] 0.0, 128
        %1211 = vxpose.xlu0.b32.cont [6/16] 0.0, 128
        %1212 = vxpose.xlu0.b32.cont [7/16] 0.0, 128
        %1213 = vxpose.xlu0.b32.cont [8/16] 0.0, 128
        %1214 = vxpose.xlu0.b32.cont [9/16] 0.0, 128
        %1215 = vxpose.xlu0.b32.cont [10/16] 0.0, 128
        %1216 = vxpose.xlu0.b32.cont [11/16] 0.0, 128
        %1217 = vxpose.xlu0.b32.cont [12/16] 0.0, 128
        %1218 = vxpose.xlu0.b32.cont [13/16] 0.0, 128
        %1219 = vxpose.xlu0.b32.cont [14/16] 0.0, 128
        %1220 = vxpose.xlu0.b32.cont [15/16] 0.0, 128
        %1221 = vxpose.xlu0.b32.end [16/16] 0.0, 128
        %v1222 = vpop.trf.xlu0
        %v1223 = vpop.trf.xlu0
        %v1224 = vpop.trf.xlu0
        %v1225 = vpop.trf.xlu0
        %v1226 = vpop.trf.xlu0
        %v1227 = vpop.trf.xlu0
        %v1228 = vpop.trf.xlu0
        %v1229 = vpop.trf.xlu0
        %v1230 = vpop.trf.xlu0
        %v1231 = vpop.trf.xlu0
        %v1232 = vpop.trf.xlu0
        %v1233 = vpop.trf.xlu0
        %v1234 = vpop.trf.xlu0
        %v1235 = vpop.trf.xlu0
        %v1236 = vpop.trf.xlu0
        %v1237 = vpop.trf.xlu0
        %1238 = vset.pattern.permute.xlu0 0
        %1239 = vperm.xlu0 %1238, %v1199
        %v1240 = vpop.permute.xlu0 %1239
        %v1242 = vlaneseq
        %v1243 = vshrl.u32 %v1242, 7
        %v1244 = vsub.s32 0, %v1243
        %v1245 = vrot.slane %v1222, %v1244
        %v1246 = vadd.f32 %v1240, %v1245
        %vm1247 = vcmp.gt.f32.partialorder %v1246, 0.0
        %v1248 = vmul.f32 %v1246, 0.2
        %v1249 = vsel %vm1247, %v1246, %v1248
        %v1250 = vsel %vm505, %v1249, -inf
        %1251 = vmax.xlane.f32.xlu0 %v1250
        %v1252 = vpop.xlane.xlu0 %1251
        %v1253 = vsub.f32 %v1249, %v1252
        %v1254 = vmul.f32 %v1253, 1.442695
        %v1255 = vpow.pop %v1254
        %v1256 = vsel %vm505, %v1255, 0.0
        %1257 = vadd.xlane.f32.xlu0 %v1256
        %v1258 = vpop.xlane.xlu0 %1257
        %v1259 = vrcp.pop %v1258
        %v1260 = vmul.f32 %v1255, %v1259
        %v1261 = vld [vmem:[%s6] sm:$0x1]
        %v1263 = vlaneseq
        %v1264 = vshrl.u32 %v1263, 7
        %v1265 = vsub.s32 0, %v1264
        %v1266 = vrot.slane %v1261, %v1265
        %v1269 = vsel %vm505, %v1260, 0
        %1271 = vmatprep.subr.mxu0 0.0
        %1272 = vmatpush1.msra.mxu0 %v1122
        %1273 = vmatprep.subr.mxu0 0.0
        %1274 = vmatpush1.msra.mxu0 0.0
        %1275 = vmatprep.subr.mxu0 0.0
        %1276 = vmatpush1.msra.mxu0 0.0
        %1277 = vmatprep.subr.mxu0 0.0
        %1278 = vmatpush1.msra.mxu0 0.0
        %1279 = vmatprep.subr.mxu0 0.0
        %1280 = vmatpush1.msra.mxu0 0.0
        %1281 = vmatprep.subr.mxu0 0.0
        %1282 = vmatpush1.msra.mxu0 0.0
        %1283 = vmatprep.subr.mxu0 0.0
        %1284 = vmatpush1.msra.mxu0 0.0
        %1285 = vmatprep.subr.mxu0 0.0
        %1286 = vmatpush1.msra.mxu0 0.0
        %1287 = vmatprep.subr.mxu0 0.0
        %1288 = vmatpush1.msra.mxu0 0.0
        %1289 = vmatprep.subr.mxu0 0.0
        %1290 = vmatpush1.msra.mxu0 0.0
        %1291 = vmatprep.subr.mxu0 0.0
        %1292 = vmatpush1.msra.mxu0 0.0
        %1293 = vmatprep.subr.mxu0 0.0
        %1294 = vmatpush1.msra.mxu0 0.0
        %1295 = vmatprep.subr.mxu0 0.0
        %1296 = vmatpush1.msra.mxu0 0.0
        %1297 = vmatprep.subr.mxu0 0.0
        %1298 = vmatpush1.msra.mxu0 0.0
        %1299 = vmatprep.subr.mxu0 0.0
        %1300 = vmatpush1.msra.mxu0 0.0
        %1301 = vmatprep.subr.mxu0 0.0
        %1302 = vmatpush1.msra.mxu0 0.0
        %1303 = vmatprep.subr.mxu0 0.0
        %1304 = vmatpush1.msra.mxu0 0.0
        %1305 = vmatprep.subr.mxu0 0.0
        %1306 = vmatpush1.msra.mxu0 0.0
        %1307 = vmatprep.subr.mxu0 0.0
        %1308 = vmatpush1.msra.mxu0 0.0
        %1309 = vmatprep.subr.mxu0 0.0
        %1310 = vmatpush1.msra.mxu0 0.0
        %1311 = vmatprep.subr.mxu0 0.0
        %1312 = vmatpush1.msra.mxu0 0.0
        %1313 = vmatprep.subr.mxu0 0.0
        %1314 = vmatpush1.msra.mxu0 0.0
        %1315 = vmatprep.subr.mxu0 0.0
        %1316 = vmatpush1.msra.mxu0 0.0
        %1317 = vmatprep.subr.mxu0 0.0
        %1318 = vmatpush1.msra.mxu0 0.0
        %1319 = vmatprep.subr.mxu0 0.0
        %1320 = vmatpush1.msra.mxu0 0.0
        %1321 = vmatprep.subr.mxu0 0.0
        %1322 = vmatpush1.msra.mxu0 0.0
        %1323 = vmatprep.subr.mxu0 0.0
        %1324 = vmatpush1.msra.mxu0 0.0
        %1325 = vmatprep.subr.mxu0 0.0
        %1326 = vmatpush1.msra.mxu0 0.0
        %1327 = vmatprep.subr.mxu0 0.0
        %1328 = vmatpush1.msra.mxu0 0.0
        %1329 = vmatprep.subr.mxu0 0.0
        %1330 = vmatpush1.msra.mxu0 0.0
        %1331 = vmatprep.subr.mxu0 0.0
        %1332 = vmatpush1.msra.mxu0 0.0
        %1333 = vmatprep.subr.mxu0 0.0
        %1334 = vmatpush1.msra.mxu0 0.0
        %1335 = vmatprep.mubr.f32.mxu0 0.0
        %1336 = vmatmul.mubr.f32.gmra.mrb[0].mxu0 %v1269
        %v1337 = vpop.f32.mrb[0].mxu0
        %v1338 = vadd.f32 %v1266, %v1337
        %v1339 = vpop.f32.mrb[0].mxu0
        %1340 = vdwg.mxu0
        %1341 = vst.msk [vmem:[%s269] sm:$0xff] %vm275, %v1338
        %s1342 = sand.u32 %s181, 1
        %s1343 = scalar_lea.sflag [#allocation3], %s1342
        %s1344 = sand.u32 %s181, 1
        %s1345 = smul.addr %s1344, 8
        %s1346 = scalar_lea.vmem [#allocation2], %s1345
        // Predicated region
        $region49: #{tpu_custom_call.1} parent=47 // pred_check
          %p1347 = pneg %p191
        $region50: #{tpu_custom_call.1} parent=47 // pred_check_branch
          %1349 = sbr.rel (%p1347) target = $region52
        $region51: #{tpu_custom_call.1} parent=47 // pred_region
          %s1351 = ssub.s32 128, 128
          %1352 = vsyncadd %s1343, %s1351
          %s1353 = smul.addr %s21, 128
          %s1354 = scalar_lea.hbm %s7, %s1353
          %s1356 = sshll.u32 %s1346, 4
          %s1357 = int_to_ptr.vmem [resolvable:$true] %s1356
          %1359 = dma.vmem_to_hbm [thread:$0]  %s1357, 128, %s1354, %s1343
        $region52: #{tpu_custom_call.1} parent=47 // pred_fallthru
          _
      $region48: #{tpu_custom_call.1} parent=5 // pred_fallthru
        _
      %p1360 = scmp.le.s32.totalorder 2, %s16
      // Predicated region
      $region53: #{tpu_custom_call.1} parent=5 // pred_check
        %p1361 = pneg %p1360
      $region54: #{tpu_custom_call.1} parent=5 // pred_check_branch
        %1363 = sbr.rel (%p1361) target = $region56
      $region55: #{tpu_custom_call.1} parent=5 // pred_region
        %s1364 = ssub.s32 %s16, 2
        // Predicated region
        $region57: #{tpu_custom_call.1} parent=55 // pred_check
          %p1365 = pneg %p197
        $region58: #{tpu_custom_call.1} parent=55 // pred_check_branch
          %1367 = sbr.rel (%p1365) target = $region60
        $region59: #{tpu_custom_call.1} parent=55 // pred_region
          %s1368 = sand.u32 %s182, 1
          %s1369 = scalar_lea.sflag [#allocation3], %s1368
          %s1370 = sand.u32 %s182, 1
          %s1371 = smul.addr %s1370, 8
          %s1372 = scalar_lea.vmem [#allocation2], %s1371
          %1373 = dma.done %s1369, 128
        $region60: #{tpu_custom_call.1} parent=55 // pred_fallthru
          _
      $region56: #{tpu_custom_call.1} parent=5 // pred_fallthru
        _
    $region6: #{tpu_custom_call.1} parent=1 // loop_footer
      %s20 = sadd.s32 1, %s16
    $region7: #{tpu_custom_call.1} parent=1 // loop_footer_branch
      %15 = sbr.rel target = $region3
    $region8: #{tpu_custom_call.1} parent=1 // loop_exit
      _
    %1374 = vsyncpa [#allocation3], 1
    %s1375 = scalar_lea.sflag [#allocation3], 1
    %1376 = vsyncpa %s1375, 1

</llo_original>
